<compile_context>
chip_gen: v6e
topology: v6e:2x2x1
jax: 0.10.0
libtpu: 0.0.40
codegen_flags: <defaults>
</compile_context>

<pallas_src>
import functools

import jax
import jax.numpy as jnp
from jax.experimental import pallas as pl
from jax.experimental.pallas import tpu as pltpu

IMAGENET_MEAN = (0.485, 0.456, 0.406)
IMAGENET_STD = (0.229, 0.224, 0.225)

VGG19_CFG = [64, 64, 'M', 128, 128, 'M', 256, 256, 256, 256, 'M',
             512, 512, 512, 512, 'M', 512, 512, 512, 512, 'M']

_COMPUTE_DTYPE = jnp.bfloat16
_VMEM_LIMIT = 48 * 1024 * 1024


# ----------------------------- Pallas kernels ------------------------------

def _conv3x3_kernel(x_ref, w_ref, b_ref, o_ref, *, apply_relu):
    """3x3 conv (stride 1) on a padded NHWC image resident in VMEM.

    x_ref: (Hp, Wp, Cin)   whole padded image for this batch element (bf16)
    w_ref: (9, Cin, tn)    weights for this Cout tile (bf16), tap index = 3*ky + kx
    b_ref: (1, tn)         bias (f32)
    o_ref: (th, W, tn)     output row tile (bf16)
    """
    th, W, tn = o_ref.shape
    cin = x_ref.shape[-1]
    row0 = pl.multiple_of(pl.program_id(2) * th, th)

    acc = None
    for ky in range(3):
        for kx in range(3):
            # shifted tap view of the VMEM-resident padded image (no im2col in HBM)
            tap = x_ref[pl.ds(row0 + ky, th), pl.ds(kx, W), :]          # (th, W, Cin)
            contrib = jnp.dot(tap.reshape(th * W, cin), w_ref[ky * 3 + kx],
                              preferred_element_type=jnp.float32)       # MXU, f32 acc
            acc = contrib if acc is None else acc + contrib

    acc = acc + b_ref[...]            # fused bias
    if apply_relu:
        acc = jnp.maximum(acc, 0.0)   # fused ReLU epilogue (VPU filler under MXU)
    o_ref[...] = acc.reshape(th, W, tn).astype(o_ref.dtype)


def _relu_kernel(x_ref, o_ref):
    o_ref[...] = jnp.maximum(x_ref[...], 0.0)


def _maxpool2_kernel(x_ref, o_ref):
    # x_ref: (tho, 2, Wo, 2*C)  -- row parity on axis 1; column parity folded into the
    #                              lane axis (even cols = [..., :C], odd = [..., C:])
    # o_ref: (tho, Wo, C)
    C = o_ref.shape[-1]
    r = jnp.maximum(x_ref[:, 0, :, :], x_ref[:, 1, :, :])     # (tho, Wo, 2C)
    o_ref[...] = jnp.maximum(r[..., :C], r[..., C:])


# ------------------------------ tiling helpers ------------------------------

def _pick_row_tile(H, W, C, *, bytes_per_elem=4, budget=2 * 1024 * 1024,
                   prefer_split=True):
    """Largest row tile dividing H whose (th, W, C) block stays under `budget`."""
    max_rows = max(1, budget // max(1, W * C * bytes_per_elem))
    th = min(H, max_rows)
    while H % th:
        th -= 1
    if prefer_split and th == H and H % 2 == 0:
        th = H // 2   # >= 2 spatial grid steps keeps both v7x TensorCores busy at batch 1
    return th


# -------------------------------- wrappers -----------------------------------

def conv3x3_nhwc(x, w9, b, padding_mode, apply_relu):
    """3x3 conv, stride 1, padding 1, optional fused ReLU.  x: NHWC bf16."""
    N, H, W, Cin = x.shape
    Cout = w9.shape[-1]
    pad_mode = 'edge' if padding_mode == 'replicate' else 'constant'
    xp = jnp.pad(x, ((0, 0), (1, 1), (1, 1), (0, 0)), mode=pad_mode)
    Hp, Wp = H + 2, W + 2

    tn = min(Cout, 256)                      # 256-wide Cout tiles fill the 2x256^2 MXU
    th = _pick_row_tile(H, W, tn)            # f32 accumulator (th*W, tn) under ~2 MiB

    kernel = functools.partial(_conv3x3_kernel, apply_relu=apply_relu)
    return pl.pallas_call(
        kernel,
        out_shape=jax.ShapeDtypeStruct((N, H, W, Cout), _COMPUTE_DTYPE),
        grid=(N, Cout // tn, H // th),
        in_specs=[
            # Whole padded image: block index depends only on n, so it stays VMEM
            # resident across all (Cout, row) steps -> input HBM read ~1x per image.
            pl.BlockSpec((None, Hp, Wp, Cin), lambda n, j, i: (n, 0, 0, 0)),
            pl.BlockSpec((9, Cin, tn), lambda n, j, i: (0, 0, j)),
            pl.BlockSpec((1, tn), lambda n, j, i: (0, j)),
        ],
        out_specs=pl.BlockSpec((None, th, W, tn), lambda n, j, i: (n, i, 0, j)),
        compiler_params=pltpu.CompilerParams(
            dimension_semantics=("parallel", "parallel", "parallel"),
            vmem_limit_bytes=_VMEM_LIMIT,
        ),
    )(xp, w9, b)


def relu_nhwc(x):
    """Standalone ReLU; only used when a conv output is captured pre-ReLU."""
    N, H, W, C = x.shape
    th = _pick_row_tile(H, W, C, bytes_per_elem=x.dtype.itemsize, prefer_split=False)
    spec = pl.BlockSpec((None, th, W, C), lambda n, i: (n, i, 0, 0))
    return pl.pallas_call(
        _relu_kernel,
        out_shape=jax.ShapeDtypeStruct(x.shape, x.dtype),
        grid=(N, H // th),
        in_specs=[spec],
        out_specs=spec,
        compiler_params=pltpu.CompilerParams(
            dimension_semantics=("parallel", "parallel")),
    )(x)


def maxpool2_nhwc(x):
    """MaxPool2d(kernel=2, stride=2), floor mode (PyTorch default)."""
    N, H, W, C = x.shape
    Ho, Wo = H // 2, W // 2
    if (H % 2) or (W % 2):
        x = x[:, :2 * Ho, :2 * Wo, :]
    # Free (contiguous) reshape: row parity -> own axis, column parity -> lane axis.
    xr = x.reshape(N, Ho, 2, Wo, 2 * C)
    tho = _pick_row_tile(Ho, Wo, C, bytes_per_elem=8, prefer_split=False)
    return pl.pallas_call(
        _maxpool2_kernel,
        out_shape=jax.ShapeDtypeStruct((N, Ho, Wo, C), x.dtype),
        grid=(N, Ho // tho),
        in_specs=[pl.BlockSpec((None, tho, 2, Wo, 2 * C),
                               lambda n, i: (n, i, 0, 0, 0))],
        out_specs=pl.BlockSpec((None, tho, Wo, C), lambda n, i: (n, i, 0, 0)),
        compiler_params=pltpu.CompilerParams(
            dimension_semantics=("parallel", "parallel")),
    )(xr)


# --------------------------- model construction ----------------------------

def build_vgg19_features(max_index, key):
    """Mirror torchvision vgg19().features[:max_index+1] with deterministic random
    weights.  TODO(synk): loading the pretrained torchvision checkpoint has no
    in-script equivalent (no file/network access)."""
    layers = []
    in_ch = 3
    mean = jnp.asarray(IMAGENET_MEAN, jnp.float32)
    sinv = 1.0 / jnp.asarray(IMAGENET_STD, jnp.float32)
    for v in VGG19_CFG:
        if len(layers) > max_index:
            break
        if v == 'M':
            layers.append(('maxpool', None))
        else:
            key, kw, kb = jax.random.split(key, 3)
            w = jax.random.normal(kw, (3, 3, in_ch, v), jnp.float32) / ((9.0 * in_ch) ** 0.5)
            b = jax.random.normal(kb, (v,), jnp.float32) * 0.01
            if not layers:
                # Layer 0 uses replicate padding (per the module), so the per-channel
                # ImageNet normalize folds exactly into W and b.
                b = b - jnp.einsum('hwio,i->o', w, mean * sinv)
                w = w * sinv.reshape(1, 1, 3, 1)
                pad = 'replicate'
            else:
                pad = 'zeros'
            w9 = w.reshape(9, in_ch, v).astype(_COMPUTE_DTYPE)   # (tap, Cin, Cout)
            layers.append(('conv', (w9, b.reshape(1, v).astype(jnp.float32), pad)))
            layers.append(('relu', None))
            in_ch = v
    return layers[:max_index + 1]


def _get_min_size(layers):
    last_layer = max(layers)
    min_size = 1
    for layer in [4, 9, 18, 27, 36]:
        if last_layer < layer:
            break
        min_size *= 2
    return min_size


def vgg_features_forward(x_nchw, model_layers, layers):
    """Equivalent of VGGFeatures.forward (pooling='max').  Returns {'input', i: ...}
    in NCHW / float32.
    TODO(synk): 'average'/'l2' Scale-wrapped pooling variants and distribute_layers()
    device placement are not implemented."""
    layers = sorted(set(layers))
    h, w = x_nchw.shape[2:4]
    min_size = _get_min_size(layers)
    if min(h, w) < min_size:
        raise ValueError(f'Input is {h}x{w} but must be at least {min_size}x{min_size}')

    max_layer = max(layers)
    feats = {'input': x_nchw}
    x = jnp.transpose(x_nchw, (0, 2, 3, 1)).astype(_COMPUTE_DTYPE)   # NCHW -> NHWC bf16
    skip_relu = False
    for i, (kind, params) in enumerate(model_layers):
        if i > max_layer:
            break
        if kind == 'conv':
            w9, b, pad = params
            capture = i in layers
            nxt_is_relu = (i + 1 < len(model_layers)
                           and model_layers[i + 1][0] == 'relu'
                           and i + 1 <= max_layer)
            fuse = nxt_is_relu and not capture   # captured conv outputs stay pre-ReLU
            x = conv3x3_nhwc(x, w9, b, pad, apply_relu=fuse)
            skip_relu = fuse
        elif kind == 'relu':
            if skip_relu:
                skip_relu = False                # already applied in the conv epilogue
            else:
                x = relu_nhwc(x)
        else:  # maxpool (pooling='max' -> plain MaxPool2d(2), scale 1.0)
            x = maxpool2_nhwc(x)
        if i in layers:
            feats[i] = jnp.transpose(x.astype(jnp.float32), (0, 3, 1, 2))  # -> NCHW f32
    return feats


# --------------------------------- main -------------------------------------

if __name__ == "__main__":
    key = jax.random.PRNGKey(0)
    k_in, k_w = jax.random.split(key)

    # Requested feature layers: 2 (conv1_2, pre-ReLU) and 4 (pool1).
    layers = [2, 4]
    x = jax.random.uniform(k_in, (2, 3, 16, 16), jnp.float32)   # small NCHW image batch

    model = build_vgg19_features(max(layers), k_w)
    feats = vgg_features_forward(x, model, layers)

    for v in feats.values():
        jax.block_until_ready(v)

    assert feats['input'].shape == (2, 3, 16, 16)
    assert feats[2].shape == (2, 64, 16, 16)
    assert feats[4].shape == (2, 64, 8, 8)
    print("KERNEL_OK")
</pallas_src>

<mosaic_0001>
module attributes {stable_mosaic.version = 11 : i64} {
  func.func @_conv3x3_kernel(%arg0: i32, %arg1: i32, %arg2: i32, %arg3: memref<1x18x18x3xbf16, #tpu.memory_space<vmem>>, %arg4: memref<9x3x64xbf16, #tpu.memory_space<vmem>>, %arg5: memref<1x64xf32, #tpu.memory_space<vmem>>, %arg6: memref<1x8x16x64xbf16, #tpu.memory_space<vmem>>) attributes {dimension_semantics = [#tpu.dimension_semantics<parallel>, #tpu.dimension_semantics<parallel>, #tpu.dimension_semantics<parallel>], iteration_bounds = array<i64: 2, 1, 2>, scalar_prefetch = 0 : i64, scratch_operands = 0 : i64, tpu.core_type = #tpu.core_type<tc>, window_params = [{transform_indices = @transform_0, window_bounds = array<i64: 1, 18, 18, 3>}, {transform_indices = @transform_1, window_bounds = array<i64: 9, 3, 64>}, {transform_indices = @transform_2, window_bounds = array<i64: 1, 64>}, {transform_indices = @transform_3, window_bounds = array<i64: 1, 8, 16, 64>}]} {
    %c8_i32 = arith.constant 8 : i32
    %0 = arith.muli %arg2, %c8_i32 : i32
    %1 = tpu.assume_multiple %0, 8 : i32
    %c0_i32 = arith.constant 0 : i32
    %2 = arith.addi %1, %c0_i32 : i32
    %c0 = arith.constant 0 : index
    %3 = arith.index_cast %2 : i32 to index
    %c0_0 = arith.constant 0 : index
    %c0_1 = arith.constant 0 : index
    %4 = vector.load %arg3[%c0, %3, %c0_0, %c0_1] : memref<1x18x18x3xbf16, #tpu.memory_space<vmem>>, vector<1x8x16x3xbf16>
    %5 = vector.shape_cast %4 : vector<1x8x16x3xbf16> to vector<8x16x3xbf16>
    %6 = vector.shape_cast %5 : vector<8x16x3xbf16> to vector<128x3xbf16>
    %c0_2 = arith.constant 0 : index
    %c0_3 = arith.constant 0 : index
    %c0_4 = arith.constant 0 : index
    %7 = vector.load %arg4[%c0_2, %c0_3, %c0_4] : memref<9x3x64xbf16, #tpu.memory_space<vmem>>, vector<1x3x64xbf16>
    %8 = vector.shape_cast %7 : vector<1x3x64xbf16> to vector<3x64xbf16>
    %cst = arith.constant dense<0.000000e+00> : vector<128x64xf32>
    %9 = tpu.matmul %6, %8, %cst {dimension_numbers = #tpu.dot_dimension_numbers<[1], [0], [0], [1], [0, 0, 1, 1], [], []>} : vector<128x3xbf16>, vector<3x64xbf16>, vector<128x64xf32> -> vector<128x64xf32>
    %c0_i32_5 = arith.constant 0 : i32
    %10 = arith.addi %1, %c0_i32_5 : i32
    %c0_6 = arith.constant 0 : index
    %11 = arith.index_cast %10 : i32 to index
    %c1 = arith.constant 1 : index
    %c0_7 = arith.constant 0 : index
    %12 = vector.load %arg3[%c0_6, %11, %c1, %c0_7] : memref<1x18x18x3xbf16, #tpu.memory_space<vmem>>, vector<1x8x16x3xbf16>
    %13 = vector.shape_cast %12 : vector<1x8x16x3xbf16> to vector<8x16x3xbf16>
    %14 = vector.shape_cast %13 : vector<8x16x3xbf16> to vector<128x3xbf16>
    %c1_8 = arith.constant 1 : index
    %c0_9 = arith.constant 0 : index
    %c0_10 = arith.constant 0 : index
    %15 = vector.load %arg4[%c1_8, %c0_9, %c0_10] : memref<9x3x64xbf16, #tpu.memory_space<vmem>>, vector<1x3x64xbf16>
    %16 = vector.shape_cast %15 : vector<1x3x64xbf16> to vector<3x64xbf16>
    %cst_11 = arith.constant dense<0.000000e+00> : vector<128x64xf32>
    %17 = tpu.matmul %14, %16, %cst_11 {dimension_numbers = #tpu.dot_dimension_numbers<[1], [0], [0], [1], [0, 0, 1, 1], [], []>} : vector<128x3xbf16>, vector<3x64xbf16>, vector<128x64xf32> -> vector<128x64xf32>
    %18 = arith.addf %9, %17 : vector<128x64xf32>
    %c0_i32_12 = arith.constant 0 : i32
    %19 = arith.addi %1, %c0_i32_12 : i32
    %c0_13 = arith.constant 0 : index
    %20 = arith.index_cast %19 : i32 to index
    %c2 = arith.constant 2 : index
    %c0_14 = arith.constant 0 : index
    %21 = vector.load %arg3[%c0_13, %20, %c2, %c0_14] : memref<1x18x18x3xbf16, #tpu.memory_space<vmem>>, vector<1x8x16x3xbf16>
    %22 = vector.shape_cast %21 : vector<1x8x16x3xbf16> to vector<8x16x3xbf16>
    %23 = vector.shape_cast %22 : vector<8x16x3xbf16> to vector<128x3xbf16>
    %c2_15 = arith.constant 2 : index
    %c0_16 = arith.constant 0 : index
    %c0_17 = arith.constant 0 : index
    %24 = vector.load %arg4[%c2_15, %c0_16, %c0_17] : memref<9x3x64xbf16, #tpu.memory_space<vmem>>, vector<1x3x64xbf16>
    %25 = vector.shape_cast %24 : vector<1x3x64xbf16> to vector<3x64xbf16>
    %cst_18 = arith.constant dense<0.000000e+00> : vector<128x64xf32>
    %26 = tpu.matmul %23, %25, %cst_18 {dimension_numbers = #tpu.dot_dimension_numbers<[1], [0], [0], [1], [0, 0, 1, 1], [], []>} : vector<128x3xbf16>, vector<3x64xbf16>, vector<128x64xf32> -> vector<128x64xf32>
    %27 = arith.addf %18, %26 : vector<128x64xf32>
    %c1_i32 = arith.constant 1 : i32
    %28 = arith.addi %1, %c1_i32 : i32
    %c0_19 = arith.constant 0 : index
    %29 = arith.index_cast %28 : i32 to index
    %c0_20 = arith.constant 0 : index
    %c0_21 = arith.constant 0 : index
    %30 = vector.load %arg3[%c0_19, %29, %c0_20, %c0_21] : memref<1x18x18x3xbf16, #tpu.memory_space<vmem>>, vector<1x8x16x3xbf16>
    %31 = vector.shape_cast %30 : vector<1x8x16x3xbf16> to vector<8x16x3xbf16>
    %32 = vector.shape_cast %31 : vector<8x16x3xbf16> to vector<128x3xbf16>
    %c3 = arith.constant 3 : index
    %c0_22 = arith.constant 0 : index
    %c0_23 = arith.constant 0 : index
    %33 = vector.load %arg4[%c3, %c0_22, %c0_23] : memref<9x3x64xbf16, #tpu.memory_space<vmem>>, vector<1x3x64xbf16>
    %34 = vector.shape_cast %33 : vector<1x3x64xbf16> to vector<3x64xbf16>
    %cst_24 = arith.constant dense<0.000000e+00> : vector<128x64xf32>
    %35 = tpu.matmul %32, %34, %cst_24 {dimension_numbers = #tpu.dot_dimension_numbers<[1], [0], [0], [1], [0, 0, 1, 1], [], []>} : vector<128x3xbf16>, vector<3x64xbf16>, vector<128x64xf32> -> vector<128x64xf32>
    %36 = arith.addf %27, %35 : vector<128x64xf32>
    %c1_i32_25 = arith.constant 1 : i32
    %37 = arith.addi %1, %c1_i32_25 : i32
    %c0_26 = arith.constant 0 : index
    %38 = arith.index_cast %37 : i32 to index
    %c1_27 = arith.constant 1 : index
    %c0_28 = arith.constant 0 : index
    %39 = vector.load %arg3[%c0_26, %38, %c1_27, %c0_28] : memref<1x18x18x3xbf16, #tpu.memory_space<vmem>>, vector<1x8x16x3xbf16>
    %40 = vector.shape_cast %39 : vector<1x8x16x3xbf16> to vector<8x16x3xbf16>
    %41 = vector.shape_cast %40 : vector<8x16x3xbf16> to vector<128x3xbf16>
    %c4 = arith.constant 4 : index
    %c0_29 = arith.constant 0 : index
    %c0_30 = arith.constant 0 : index
    %42 = vector.load %arg4[%c4, %c0_29, %c0_30] : memref<9x3x64xbf16, #tpu.memory_space<vmem>>, vector<1x3x64xbf16>
    %43 = vector.shape_cast %42 : vector<1x3x64xbf16> to vector<3x64xbf16>
    %cst_31 = arith.constant dense<0.000000e+00> : vector<128x64xf32>
    %44 = tpu.matmul %41, %43, %cst_31 {dimension_numbers = #tpu.dot_dimension_numbers<[1], [0], [0], [1], [0, 0, 1, 1], [], []>} : vector<128x3xbf16>, vector<3x64xbf16>, vector<128x64xf32> -> vector<128x64xf32>
    %45 = arith.addf %36, %44 : vector<128x64xf32>
    %c1_i32_32 = arith.constant 1 : i32
    %46 = arith.addi %1, %c1_i32_32 : i32
    %c0_33 = arith.constant 0 : index
    %47 = arith.index_cast %46 : i32 to index
    %c2_34 = arith.constant 2 : index
    %c0_35 = arith.constant 0 : index
    %48 = vector.load %arg3[%c0_33, %47, %c2_34, %c0_35] : memref<1x18x18x3xbf16, #tpu.memory_space<vmem>>, vector<1x8x16x3xbf16>
    %49 = vector.shape_cast %48 : vector<1x8x16x3xbf16> to vector<8x16x3xbf16>
    %50 = vector.shape_cast %49 : vector<8x16x3xbf16> to vector<128x3xbf16>
    %c5 = arith.constant 5 : index
    %c0_36 = arith.constant 0 : index
    %c0_37 = arith.constant 0 : index
    %51 = vector.load %arg4[%c5, %c0_36, %c0_37] : memref<9x3x64xbf16, #tpu.memory_space<vmem>>, vector<1x3x64xbf16>
    %52 = vector.shape_cast %51 : vector<1x3x64xbf16> to vector<3x64xbf16>
    %cst_38 = arith.constant dense<0.000000e+00> : vector<128x64xf32>
    %53 = tpu.matmul %50, %52, %cst_38 {dimension_numbers = #tpu.dot_dimension_numbers<[1], [0], [0], [1], [0, 0, 1, 1], [], []>} : vector<128x3xbf16>, vector<3x64xbf16>, vector<128x64xf32> -> vector<128x64xf32>
    %54 = arith.addf %45, %53 : vector<128x64xf32>
    %c2_i32 = arith.constant 2 : i32
    %55 = arith.addi %1, %c2_i32 : i32
    %c0_39 = arith.constant 0 : index
    %56 = arith.index_cast %55 : i32 to index
    %c0_40 = arith.constant 0 : index
    %c0_41 = arith.constant 0 : index
    %57 = vector.load %arg3[%c0_39, %56, %c0_40, %c0_41] : memref<1x18x18x3xbf16, #tpu.memory_space<vmem>>, vector<1x8x16x3xbf16>
    %58 = vector.shape_cast %57 : vector<1x8x16x3xbf16> to vector<8x16x3xbf16>
    %59 = vector.shape_cast %58 : vector<8x16x3xbf16> to vector<128x3xbf16>
    %c6 = arith.constant 6 : index
    %c0_42 = arith.constant 0 : index
    %c0_43 = arith.constant 0 : index
    %60 = vector.load %arg4[%c6, %c0_42, %c0_43] : memref<9x3x64xbf16, #tpu.memory_space<vmem>>, vector<1x3x64xbf16>
    %61 = vector.shape_cast %60 : vector<1x3x64xbf16> to vector<3x64xbf16>
    %cst_44 = arith.constant dense<0.000000e+00> : vector<128x64xf32>
    %62 = tpu.matmul %59, %61, %cst_44 {dimension_numbers = #tpu.dot_dimension_numbers<[1], [0], [0], [1], [0, 0, 1, 1], [], []>} : vector<128x3xbf16>, vector<3x64xbf16>, vector<128x64xf32> -> vector<128x64xf32>
    %63 = arith.addf %54, %62 : vector<128x64xf32>
    %c2_i32_45 = arith.constant 2 : i32
    %64 = arith.addi %1, %c2_i32_45 : i32
    %c0_46 = arith.constant 0 : index
    %65 = arith.index_cast %64 : i32 to index
    %c1_47 = arith.constant 1 : index
    %c0_48 = arith.constant 0 : index
    %66 = vector.load %arg3[%c0_46, %65, %c1_47, %c0_48] : memref<1x18x18x3xbf16, #tpu.memory_space<vmem>>, vector<1x8x16x3xbf16>
    %67 = vector.shape_cast %66 : vector<1x8x16x3xbf16> to vector<8x16x3xbf16>
    %68 = vector.shape_cast %67 : vector<8x16x3xbf16> to vector<128x3xbf16>
    %c7 = arith.constant 7 : index
    %c0_49 = arith.constant 0 : index
    %c0_50 = arith.constant 0 : index
    %69 = vector.load %arg4[%c7, %c0_49, %c0_50] : memref<9x3x64xbf16, #tpu.memory_space<vmem>>, vector<1x3x64xbf16>
    %70 = vector.shape_cast %69 : vector<1x3x64xbf16> to vector<3x64xbf16>
    %cst_51 = arith.constant dense<0.000000e+00> : vector<128x64xf32>
    %71 = tpu.matmul %68, %70, %cst_51 {dimension_numbers = #tpu.dot_dimension_numbers<[1], [0], [0], [1], [0, 0, 1, 1], [], []>} : vector<128x3xbf16>, vector<3x64xbf16>, vector<128x64xf32> -> vector<128x64xf32>
    %72 = arith.addf %63, %71 : vector<128x64xf32>
    %c2_i32_52 = arith.constant 2 : i32
    %73 = arith.addi %1, %c2_i32_52 : i32
    %c0_53 = arith.constant 0 : index
    %74 = arith.index_cast %73 : i32 to index
    %c2_54 = arith.constant 2 : index
    %c0_55 = arith.constant 0 : index
    %75 = vector.load %arg3[%c0_53, %74, %c2_54, %c0_55] : memref<1x18x18x3xbf16, #tpu.memory_space<vmem>>, vector<1x8x16x3xbf16>
    %76 = vector.shape_cast %75 : vector<1x8x16x3xbf16> to vector<8x16x3xbf16>
    %77 = vector.shape_cast %76 : vector<8x16x3xbf16> to vector<128x3xbf16>
    %c8 = arith.constant 8 : index
    %c0_56 = arith.constant 0 : index
    %c0_57 = arith.constant 0 : index
    %78 = vector.load %arg4[%c8, %c0_56, %c0_57] : memref<9x3x64xbf16, #tpu.memory_space<vmem>>, vector<1x3x64xbf16>
    %79 = vector.shape_cast %78 : vector<1x3x64xbf16> to vector<3x64xbf16>
    %cst_58 = arith.constant dense<0.000000e+00> : vector<128x64xf32>
    %80 = tpu.matmul %77, %79, %cst_58 {dimension_numbers = #tpu.dot_dimension_numbers<[1], [0], [0], [1], [0, 0, 1, 1], [], []>} : vector<128x3xbf16>, vector<3x64xbf16>, vector<128x64xf32> -> vector<128x64xf32>
    %81 = arith.addf %72, %80 : vector<128x64xf32>
    %c0_59 = arith.constant 0 : index
    %c0_60 = arith.constant 0 : index
    %82 = vector.load %arg5[%c0_59, %c0_60] : memref<1x64xf32, #tpu.memory_space<vmem>>, vector<1x64xf32>
    %83 = vector.broadcast %82 : vector<1x64xf32> to vector<128x64xf32>
    %84 = arith.addf %81, %83 : vector<128x64xf32>
    %cst_61 = arith.constant 0.000000e+00 : f32
    %85 = vector.broadcast %cst_61 : f32 to vector<128x64xf32>
    %86 = arith.maximumf %84, %85 : vector<128x64xf32>
    %87 = vector.shape_cast %86 : vector<128x64xf32> to vector<8x16x64xf32>
    %88 = arith.truncf %87 : vector<8x16x64xf32> to vector<8x16x64xbf16>
    %c0_62 = arith.constant 0 : index
    %c0_63 = arith.constant 0 : index
    %c0_64 = arith.constant 0 : index
    %c0_65 = arith.constant 0 : index
    %89 = vector.load %arg6[%c0_62, %c0_63, %c0_64, %c0_65] : memref<1x8x16x64xbf16, #tpu.memory_space<vmem>>, vector<1x8x16x64xbf16>
    %90 = vector.shape_cast %89 : vector<1x8x16x64xbf16> to vector<8x16x64xbf16>
    %91 = vector.shape_cast %88 : vector<8x16x64xbf16> to vector<1x8x16x64xbf16>
    tpu.vector_store %arg6[%c0_62, %c0_63, %c0_64, %c0_65], %91 {strides = array<i32>} : memref<1x8x16x64xbf16, #tpu.memory_space<vmem>>, vector<1x8x16x64xbf16>,
    return
  }
  func.func @transform_0(%arg0: i32, %arg1: i32, %arg2: i32) -> (i32, i32, i32, i32) {
    %c0_i32 = arith.constant 0 : i32
    %c0_i32_0 = arith.constant 0 : i32
    %c0_i32_1 = arith.constant 0 : i32
    %c0_i32_2 = arith.constant 0 : i32
    return %arg0, %c0_i32, %c0_i32_0, %c0_i32_1 : i32, i32, i32, i32
  }
  func.func @transform_1(%arg0: i32, %arg1: i32, %arg2: i32) -> (i32, i32, i32) {
    %c0_i32 = arith.constant 0 : i32
    %c0_i32_0 = arith.constant 0 : i32
    %c0_i32_1 = arith.constant 0 : i32
    return %c0_i32, %c0_i32_0, %arg1 : i32, i32, i32
  }
  func.func @transform_2(%arg0: i32, %arg1: i32, %arg2: i32) -> (i32, i32) {
    %c0_i32 = arith.constant 0 : i32
    %c0_i32_0 = arith.constant 0 : i32
    return %c0_i32, %arg1 : i32, i32
  }
  func.func @transform_3(%arg0: i32, %arg1: i32, %arg2: i32) -> (i32, i32, i32, i32) {
    %c0_i32 = arith.constant 0 : i32
    %c0_i32_0 = arith.constant 0 : i32
    return %arg0, %arg2, %c0_i32, %arg1 : i32, i32, i32, i32
  }
}

</mosaic_0001>

<llo_original>
// kernel: tpu_custom_call.1
$region0: #{tpu_custom_call.1}
  #allocation0 [shape = 'u32[]', space=smem, size = 0x4, offset = 0x4, fixed_abs, tag = 'smem constant byte address 0x4 - core index']
  #allocation1 [shape = 'u32[144,128]{1,0:T(1,128)}', space=vmem, size = 0x12000, scoped, tag = 'internal scratch']
  %s0 = inlined_call_operand.vmem [shape: bf16[2,18,18,3], index: 0, kind: input, shape index: {}]
  %s1 = inlined_call_operand.vmem [shape: bf16[9,3,64], index: 1, kind: input, shape index: {}]
  %s2 = inlined_call_operand.vmem [shape: f32[1,64], index: 2, kind: input, shape index: {}]
  %s3 = inlined_call_operand.hbm [shape: bf16[2,16,16,64], index: 3, kind: output, shape index: {}]
  %s4 = sld [smem:[#allocation0]]
  $region45: #{tpu_custom_call.1} parent=0
    _
  %s6 = ssub.s32 1, %s4
  %s7 = scalar_select 0, %s6, %s4
  $region1: #{tpu_custom_call.1} parent=0
    #allocation2 [shape = 'u8[65536]{0}', space=vmem, size = 0x10000, scoped, tag = 'output window, operand 0']
    #allocation3 [shape = 's32[2]{0}', space=sflag, size = 0x8, scoped, tag = 'scoped memory for tpu_custom_call.1']
    %8 = vsyncpa [#allocation3], 0
    %s9 = scalar_lea.sflag [#allocation3], 1
    %10 = vsyncpa %s9, 0
    loop: start=0, step=1, limit=6
    $region2: #{tpu_custom_call.1} parent=1 // loop_pre_header
      _
    $region3: #{tpu_custom_call.1} parent=1 // loop_header
      %s12 = sphi 0, %s16
      %p13 = scmp.ge.s32.totalorder %s12, 6
      %s19 = sphi 0, %s38
      %s20 = sphi 0, %s34
      %s21 = sphi 0, %s30
      %s22 = sphi 0, %s19
      %s23 = sphi 0, %s20
      %s24 = sphi 0, %s21
      %s25 = sphi 0, %s22
      %s26 = sphi 0, %s23
      %s27 = sphi 0, %s24
      %s41 = sphi 0, %s43
      %s44 = sphi 0, %s41
      %s45 = sphi 0, %s44
      %s61 = sphi 0, %s45
      %s67 = sphi 0, %s69
      %s70 = sphi 0, %s67
      %s71 = sphi 0, %s70
      %s87 = sphi 0, %s71
      %s93 = sphi 0, %s95
      %s96 = sphi 0, %s93
      %s97 = sphi 0, %s96
      %s113 = sphi 0, %s97
      %s123 = sphi 0, %s125
      %s126 = sphi 0, %s123
      %s127 = sphi 0, %s126
      %s143 = sphi 0, %s127
    $region4: #{tpu_custom_call.1} parent=1 // loop_header_branch
      %15 = sbr.rel (%p13) target = $region8
    $region5: #{tpu_custom_call.1} parent=1 // loop_body
      %s17 = ssub.s32 %s12, 1
      %s18 = ssub.s32 %s12, 2
      %s28 = sadd.s32 1, %s21
      %p29 = scmp.ge.s32.totalorder %s28, 2
      %s30 = scalar_select %p29, 0, %s28
      %s31 = sadd.s32 1, %s20
      %s32 = scalar_select %p29, %s31, %s20
      %p33 = scmp.ge.s32.totalorder %s32, 1
      %s34 = scalar_select %p33, 0, %s32
      %s35 = sadd.s32 1, %s19
      %s36 = scalar_select %p33, %s35, %s19
      %p37 = scmp.ge.s32.totalorder %s36, 2
      %s38 = scalar_select %p37, 0, %s36
      %s39 = ssub.s32 %s19, %s38
      %p40 = scmp.eq.s32.totalorder %s39, 0
      %s42 = sadd.s32 %s41, 1
      %s43 = scalar_select %p40, %s41, %s42
      %p46 = pneg %p40
      %p47 = scmp.eq.s32.totalorder %s12, 3
      %p48 = por %p46, %p47
      %p49 = scmp.ne.s32.totalorder %s41, %s44
      %p50 = scmp.eq.s32.totalorder %s12, 0
      %p51 = por %p49, %p50
      %p52 = scmp.ne.s32.totalorder %s41, %s44
      %p53 = scmp.eq.s32.totalorder %s17, 3
      %p54 = por %p52, %p53
      %p55 = scmp.ne.s32.totalorder %s44, %s45
      %p56 = scmp.eq.s32.totalorder %s17, 0
      %p57 = por %p55, %p56
      %p58 = scmp.ne.s32.totalorder %s44, %s45
      %p59 = scmp.eq.s32.totalorder %s18, 3
      %p60 = por %p58, %p59
      %p62 = scmp.ne.s32.totalorder %s45, %s61
      %p63 = scmp.eq.s32.totalorder %s18, 0
      %p64 = por %p62, %p63
      %s65 = ssub.s32 %s20, %s34
      %p66 = scmp.eq.s32.totalorder %s65, 0
      %s68 = sadd.s32 %s67, 1
      %s69 = scalar_select %p66, %s67, %s68
      %p72 = pneg %p66
      %p73 = scmp.eq.s32.totalorder %s12, 3
      %p74 = por %p72, %p73
      %p75 = scmp.ne.s32.totalorder %s67, %s70
      %p76 = scmp.eq.s32.totalorder %s12, 0
      %p77 = por %p75, %p76
      %p78 = scmp.ne.s32.totalorder %s67, %s70
      %p79 = scmp.eq.s32.totalorder %s17, 3
      %p80 = por %p78, %p79
      %p81 = scmp.ne.s32.totalorder %s70, %s71
      %p82 = scmp.eq.s32.totalorder %s17, 0
      %p83 = por %p81, %p82
      %p84 = scmp.ne.s32.totalorder %s70, %s71
      %p85 = scmp.eq.s32.totalorder %s18, 3
      %p86 = por %p84, %p85
      %p88 = scmp.ne.s32.totalorder %s71, %s87
      %p89 = scmp.eq.s32.totalorder %s18, 0
      %p90 = por %p88, %p89
      %s91 = ssub.s32 %s20, %s34
      %p92 = scmp.eq.s32.totalorder %s91, 0
      %s94 = sadd.s32 %s93, 1
      %s95 = scalar_select %p92, %s93, %s94
      %p98 = pneg %p92
      %p99 = scmp.eq.s32.totalorder %s12, 3
      %p100 = por %p98, %p99
      %p101 = scmp.ne.s32.totalorder %s93, %s96
      %p102 = scmp.eq.s32.totalorder %s12, 0
      %p103 = por %p101, %p102
      %p104 = scmp.ne.s32.totalorder %s93, %s96
      %p105 = scmp.eq.s32.totalorder %s17, 3
      %p106 = por %p104, %p105
      %p107 = scmp.ne.s32.totalorder %s96, %s97
      %p108 = scmp.eq.s32.totalorder %s17, 0
      %p109 = por %p107, %p108
      %p110 = scmp.ne.s32.totalorder %s96, %s97
      %p111 = scmp.eq.s32.totalorder %s18, 3
      %p112 = por %p110, %p111
      %p114 = scmp.ne.s32.totalorder %s97, %s113
      %p115 = scmp.eq.s32.totalorder %s18, 0
      %p116 = por %p114, %p115
      %s117 = ssub.s32 %s19, %s38
      %s118 = ssub.s32 %s21, %s30
      %s119 = sor.u32 %s117, %s118
      %s120 = ssub.s32 %s20, %s34
      %s121 = sor.u32 %s119, %s120
      %p122 = scmp.eq.s32.totalorder %s121, 0
      %s124 = sadd.s32 %s123, 1
      %s125 = scalar_select %p122, %s123, %s124
      %p128 = pneg %p122
      %p129 = scmp.eq.s32.totalorder %s12, 3
      %p130 = por %p128, %p129
      %p131 = scmp.ne.s32.totalorder %s123, %s126
      %p132 = scmp.eq.s32.totalorder %s12, 0
      %p133 = por %p131, %p132
      %p134 = scmp.ne.s32.totalorder %s123, %s126
      %p135 = scmp.eq.s32.totalorder %s17, 3
      %p136 = por %p134, %p135
      %p137 = scmp.ne.s32.totalorder %s126, %s127
      %p138 = scmp.eq.s32.totalorder %s17, 0
      %p139 = por %p137, %p138
      %p140 = scmp.ne.s32.totalorder %s126, %s127
      %p141 = scmp.eq.s32.totalorder %s18, 3
      %p142 = por %p140, %p141
      %p144 = scmp.ne.s32.totalorder %s127, %s143
      %p145 = scmp.eq.s32.totalorder %s18, 0
      %p146 = por %p144, %p145
      %p147 = scmp.le.s32.totalorder 1, %s12
      %p148 = scmp.lt.s32.totalorder %s12, 5
      %p149 = pnand %p147, %p148
      %p150 = pneg %p149
      // Predicated region
      $region9: #{tpu_custom_call.1} parent=5 // pred_check
        _
      $region10: #{tpu_custom_call.1} parent=5 // pred_check_branch
        %152 = sbr.rel (%p149) target = $region12
      $region11: #{tpu_custom_call.1} parent=5 // pred_region
        %s153 = ssub.s32 %s12, 1
        // Predicated region
        $region13: #{tpu_custom_call.1} parent=11 // pred_check
          %p154 = pneg %p83
        $region14: #{tpu_custom_call.1} parent=11 // pred_check_branch
          %156 = sbr.rel (%p154) target = $region16
        $region15: #{tpu_custom_call.1} parent=11 // pred_region
          %p157 = scmp.lt.s32.totalorder %s23, 0
          %s158 = scalar_select %p157, %s23, 0
          %s159 = smul.addr %s158, 2
          %s160 = scalar_lea.vmem %s1, %s159
        $region16: #{tpu_custom_call.1} parent=11 // pred_fallthru
          _
        // Predicated region
        $region17: #{tpu_custom_call.1} parent=11 // pred_check
          %p161 = pneg %p109
        $region18: #{tpu_custom_call.1} parent=11 // pred_check_branch
          %163 = sbr.rel (%p161) target = $region20
        $region19: #{tpu_custom_call.1} parent=11 // pred_region
          %p164 = scmp.lt.s32.totalorder %s23, 0
          %s165 = scalar_select %p164, %s23, 0
          %s166 = scalar_lea.vmem %s2, %s165
        $region20: #{tpu_custom_call.1} parent=11 // pred_fallthru
          _
      $region12: #{tpu_custom_call.1} parent=5 // pred_fallthru
        _
      %p167 = scmp.lt.s32.totalorder %s12, 4
      // Predicated region
      $region21: #{tpu_custom_call.1} parent=5 // pred_check
        %p168 = pneg %p167
      $region22: #{tpu_custom_call.1} parent=5 // pred_check_branch
        %170 = sbr.rel (%p168) target = $region24
      $region23: #{tpu_custom_call.1} parent=5 // pred_region
        // Predicated region
        $region25: #{tpu_custom_call.1} parent=23 // pred_check
          %p171 = pneg %p51
        $region26: #{tpu_custom_call.1} parent=23 // pred_check_branch
          %173 = sbr.rel (%p171) target = $region28
        $region27: #{tpu_custom_call.1} parent=23 // pred_region
          %p174 = scmp.lt.s32.totalorder %s19, 1
          %s175 = scalar_select %p174, %s19, 1
          %s176 = smul.addr %s175, 54
          %s177 = smul.addr %s176, 4
          %s178 = scalar_lea.vmem %s0, %s177
        $region28: #{tpu_custom_call.1} parent=23 // pred_fallthru
          _
      $region24: #{tpu_custom_call.1} parent=5 // pred_fallthru
        _
      %p179 = scmp.le.s32.totalorder 1, %s12
      %p180 = scmp.lt.s32.totalorder %s12, 5
      %p181 = pnand %p179, %p180
      %p182 = pneg %p181
      // Predicated region
      $region29: #{tpu_custom_call.1} parent=5 // pred_check
        _
      $region30: #{tpu_custom_call.1} parent=5 // pred_check_branch
        %184 = sbr.rel (%p181) target = $region32
      $region31: #{tpu_custom_call.1} parent=5 // pred_region
        %s185 = ssub.s32 %s12, 1
        %p186 = scmp.lt.s32.totalorder %s22, 1
        %s187 = scalar_select %p186, %s22, 1
        %s188 = smul.addr %s187, 54
        %s189 = smul.addr %s188, 4
        %s190 = scalar_lea.vmem %s0, %s189
        %p191 = pneg %p57
        %p192 = pneg %p54
        %p193 = scmp.lt.s32.totalorder %s23, 0
        %s194 = scalar_select %p193, %s23, 0
        %s195 = smul.addr %s194, 2
        %s196 = scalar_lea.vmem %s1, %s195
        %p197 = pneg %p83
        %p198 = pneg %p80
        %p199 = scmp.lt.s32.totalorder %s23, 0
        %s200 = scalar_select %p199, %s23, 0
        %s201 = scalar_lea.vmem %s2, %s200
        %p202 = pneg %p109
        %p203 = pneg %p106
        %p204 = pneg %p139
        %p205 = pneg %p136
        %s206 = sand.u32 %s126, 1
        %s207 = scalar_lea.sflag [#allocation3], %s206
        %s208 = sand.u32 %s126, 1
        %s209 = smul.addr %s208, 64
        %s210 = scalar_lea.vmem [#allocation2], %s209
        %p211 = scmp.lt.s32.totalorder %s22, 1
        %s212 = scalar_select %p211, %s22, 1
        %s213 = smul.addr %s212, 54
        %s214 = smul.addr %s213, 4
        %s215 = scalar_lea.vmem %s0, %s214
        %p216 = scmp.lt.s32.totalorder %s23, 0
        %s217 = scalar_select %p216, %s23, 0
        %s218 = smul.addr %s217, 2
        %s219 = scalar_lea.vmem %s1, %s218
        %p220 = scmp.lt.s32.totalorder %s23, 0
        %s221 = scalar_select %p220, %s23, 0
        %s222 = scalar_lea.vmem %s2, %s221
        %s223 = smul.u32 8, %s24
        %s225 = smul.u32 %s24, 8
        %s226 = smul.u32 %s225, 3
        %s227 = smul.addr %s226, 4
        %s228 = scalar_lea.vmem %s215, %s227
        %v229 = vld [vmem:[%s228] sm:$0xf]
        %v230 = vld [vmem:[%s228 + $0x4] sm:$0xf]
        %v231 = vld [vmem:[%s228 + $0xc] sm:$0xf]
        %v232 = vld [vmem:[%s228 + $0x10] sm:$0xf]
        %v233 = vld [vmem:[%s228 + $0x18] sm:$0xf]
        %v234 = vld [vmem:[%s228 + $0x1c] sm:$0xf]
        %v235 = vld [vmem:[%s228 + $0x24] sm:$0xf]
        %v236 = vld [vmem:[%s228 + $0x28] sm:$0xf]
        %v237 = vld [vmem:[%s228 + $0x30] sm:$0xf]
        %v238 = vld [vmem:[%s228 + $0x34] sm:$0xf]
        %v239 = vld [vmem:[%s228 + $0x3c] sm:$0xf]
        %v240 = vld [vmem:[%s228 + $0x40] sm:$0xf]
        %v241 = vld [vmem:[%s228 + $0x48] sm:$0xf]
        %v242 = vld [vmem:[%s228 + $0x4c] sm:$0xf]
        %v243 = vld [vmem:[%s228 + $0x54] sm:$0xf]
        %v244 = vld [vmem:[%s228 + $0x58] sm:$0xf]
        %v245 = vld [vmem:[%s219] sm:$0x3]
        %v246 = vld [vmem:[%s228 + $0x8] sm:$0x1]
        %v247 = vld [vmem:[%s228 + $0x14] sm:$0x1]
        %v248 = vld [vmem:[%s228 + $0x20] sm:$0x1]
        %v249 = vld [vmem:[%s228 + $0x2c] sm:$0x1]
        %v250 = vld [vmem:[%s228 + $0x38] sm:$0x1]
        %v251 = vld [vmem:[%s228 + $0x44] sm:$0x1]
        %v252 = vld [vmem:[%s228 + $0x50] sm:$0x1]
        %v253 = vld [vmem:[%s228 + $0x5c] sm:$0x1]
        %vm254 = vsmask.f32 3328
        %vm255 = vsmask.f32 7440
        %vm256 = vmor %vm254, %vm255
        %v258 = vshrl.u32 %v229, 16
        %v260 = vrot.slane %v258, 4
        %v261 = vshll.u32 %v229, 16
        %v263 = vrot.slane %v261, 5
        %v264 = vor.u32 %v260, %v263
        %v265 = vrot.slane %v264, 4
        %v267 = vshll.u32 %v230, 16
        %v269 = vrot.slane %v267, 5
        %v270 = vsel %vm256, %v265, %v269
        %v271 = vshrl.u32 %v230, 16
        %v273 = vrot.slane %v271, 4
        %v274 = vor.u32 %v273, %v269
        %v275 = vrot.slane %v274, 4
        %v277 = vshll.u32 %v246, 16
        %v279 = vrot.slane %v277, 5
        %v280 = vsel %vm256, %v275, %v279
        %v282 = vshrl.u32 %v231, 16
        %v284 = vrot.slane %v282, 4
        %v285 = vshll.u32 %v231, 16
        %v287 = vrot.slane %v285, 5
        %v288 = vor.u32 %v284, %v287
        %v289 = vrot.slane %v288, 4
        %v291 = vshll.u32 %v232, 16
        %v293 = vrot.slane %v291, 5
        %v294 = vsel %vm256, %v289, %v293
        %v295 = vshrl.u32 %v232, 16
        %v297 = vrot.slane %v295, 4
        %v298 = vor.u32 %v297, %v293
        %v299 = vrot.slane %v298, 4
        %v301 = vshll.u32 %v247, 16
        %v303 = vrot.slane %v301, 5
        %v304 = vsel %vm256, %v299, %v303
        %v306 = vshrl.u32 %v233, 16
        %v308 = vrot.slane %v306, 4
        %v309 = vshll.u32 %v233, 16
        %v311 = vrot.slane %v309, 5
        %v312 = vor.u32 %v308, %v311
        %v313 = vrot.slane %v312, 4
        %v315 = vshll.u32 %v234, 16
        %v317 = vrot.slane %v315, 5
        %v318 = vsel %vm256, %v313, %v317
        %v319 = vshrl.u32 %v234, 16
        %v321 = vrot.slane %v319, 4
        %v322 = vor.u32 %v321, %v317
        %v323 = vrot.slane %v322, 4
        %v325 = vshll.u32 %v248, 16
        %v327 = vrot.slane %v325, 5
        %v328 = vsel %vm256, %v323, %v327
        %v330 = vshrl.u32 %v235, 16
        %v332 = vrot.slane %v330, 4
        %v333 = vshll.u32 %v235, 16
        %v335 = vrot.slane %v333, 5
        %v336 = vor.u32 %v332, %v335
        %v337 = vrot.slane %v336, 4
        %v339 = vshll.u32 %v236, 16
        %v341 = vrot.slane %v339, 5
        %v342 = vsel %vm256, %v337, %v341
        %v343 = vshrl.u32 %v236, 16
        %v345 = vrot.slane %v343, 4
        %v346 = vor.u32 %v345, %v341
        %v347 = vrot.slane %v346, 4
        %v349 = vshll.u32 %v249, 16
        %v351 = vrot.slane %v349, 5
        %v352 = vsel %vm256, %v347, %v351
        %v354 = vshrl.u32 %v237, 16
        %v356 = vrot.slane %v354, 4
        %v357 = vshll.u32 %v237, 16
        %v359 = vrot.slane %v357, 5
        %v360 = vor.u32 %v356, %v359
        %v361 = vrot.slane %v360, 4
        %v363 = vshll.u32 %v238, 16
        %v365 = vrot.slane %v363, 5
        %v366 = vsel %vm256, %v361, %v365
        %v367 = vshrl.u32 %v238, 16
        %v369 = vrot.slane %v367, 4
        %v370 = vor.u32 %v369, %v365
        %v371 = vrot.slane %v370, 4
        %v373 = vshll.u32 %v250, 16
        %v375 = vrot.slane %v373, 5
        %v376 = vsel %vm256, %v371, %v375
        %v378 = vshrl.u32 %v239, 16
        %v380 = vrot.slane %v378, 4
        %v381 = vshll.u32 %v239, 16
        %v383 = vrot.slane %v381, 5
        %v384 = vor.u32 %v380, %v383
        %v385 = vrot.slane %v384, 4
        %v387 = vshll.u32 %v240, 16
        %v389 = vrot.slane %v387, 5
        %v390 = vsel %vm256, %v385, %v389
        %v391 = vshrl.u32 %v240, 16
        %v393 = vrot.slane %v391, 4
        %v394 = vor.u32 %v393, %v389
        %v395 = vrot.slane %v394, 4
        %v397 = vshll.u32 %v251, 16
        %v399 = vrot.slane %v397, 5
        %v400 = vsel %vm256, %v395, %v399
        %v402 = vshrl.u32 %v241, 16
        %v404 = vrot.slane %v402, 4
        %v405 = vshll.u32 %v241, 16
        %v407 = vrot.slane %v405, 5
        %v408 = vor.u32 %v404, %v407
        %v409 = vrot.slane %v408, 4
        %v411 = vshll.u32 %v242, 16
        %v413 = vrot.slane %v411, 5
        %v414 = vsel %vm256, %v409, %v413
        %v415 = vshrl.u32 %v242, 16
        %v417 = vrot.slane %v415, 4
        %v418 = vor.u32 %v417, %v413
        %v419 = vrot.slane %v418, 4
        %v421 = vshll.u32 %v252, 16
        %v423 = vrot.slane %v421, 5
        %v424 = vsel %vm256, %v419, %v423
        %v426 = vshrl.u32 %v243, 16
        %v428 = vrot.slane %v426, 4
        %v429 = vshll.u32 %v243, 16
        %v431 = vrot.slane %v429, 5
        %v432 = vor.u32 %v428, %v431
        %v433 = vrot.slane %v432, 4
        %v435 = vshll.u32 %v244, 16
        %v437 = vrot.slane %v435, 5
        %v438 = vsel %vm256, %v433, %v437
        %v439 = vshrl.u32 %v244, 16
        %v441 = vrot.slane %v439, 4
        %v442 = vor.u32 %v441, %v437
        %v443 = vrot.slane %v442, 4
        %v445 = vshll.u32 %v253, 16
        %v447 = vrot.slane %v445, 5
        %v448 = vsel %vm256, %v443, %v447
        %s449 = scalar_lea.vmem %s219, 2
        %v450 = vld [vmem:[%s449] sm:$0x3]
        %v451 = vunpack.c.l.b16 %v270
        %v452 = vunpack.c.l.b16 %v280
        %v453 = vunpack.c.l.b16 %v294
        %v454 = vunpack.c.l.b16 %v304
        %v455 = vunpack.c.l.b16 %v318
        %v456 = vunpack.c.l.b16 %v328
        %v457 = vunpack.c.l.b16 %v342
        %v458 = vunpack.c.l.b16 %v352
        %v459 = vunpack.c.l.b16 %v366
        %v460 = vunpack.c.l.b16 %v376
        %v461 = vunpack.c.l.b16 %v390
        %v462 = vunpack.c.l.b16 %v400
        %v463 = vunpack.c.l.b16 %v414
        %v464 = vunpack.c.l.b16 %v424
        %v465 = vunpack.c.l.b16 %v438
        %v466 = vunpack.c.l.b16 %v448
        %v467 = vpack.c.b16 %v452, %v451
        %v468 = vpack.c.b16 %v454, %v453
        %v469 = vpack.c.b16 %v456, %v455
        %v470 = vpack.c.b16 %v458, %v457
        %v471 = vpack.c.b16 %v460, %v459
        %v472 = vpack.c.b16 %v462, %v461
        %v473 = vpack.c.b16 %v464, %v463
        %v474 = vpack.c.b16 %v466, %v465
        %vm475 = vcmask 23552
        %v477 = vsel %vm475, %v467, 0
        %v480 = vsel %vm475, %v468, 0
        %v483 = vsel %vm475, %v469, 0
        %v486 = vsel %vm475, %v470, 0
        %v489 = vsel %vm475, %v471, 0
        %v492 = vsel %vm475, %v472, 0
        %v495 = vsel %vm475, %v473, 0
        %v498 = vsel %vm475, %v474, 0
        %vm500 = vcmask 1040384
        %vm501 = vcmask 1041408
        %v502 = vsel %vm500, 4294967295, 65535
        %v503 = vsel %vm501, %v502, 0
        %v505 = vand.u32 %v450, %v503
        %507 = vmatprep.subr.bf16.mxu0 0
        %508 = vmatpush1.bf16.msra.mxu0 0
        %509 = vmatprep.subr.bf16.mxu0 0
        %510 = vmatpush1.bf16.msra.mxu0 0
        %511 = vmatprep.subr.bf16.mxu0 0
        %512 = vmatpush1.bf16.msra.mxu0 0
        %513 = vmatprep.subr.bf16.mxu0 0
        %514 = vmatpush1.bf16.msra.mxu0 0
        %515 = vmatprep.subr.bf16.mxu0 0
        %516 = vmatpush1.bf16.msra.mxu0 0
        %517 = vmatprep.subr.bf16.mxu0 0
        %518 = vmatpush1.bf16.msra.mxu0 0
        %519 = vmatprep.subr.bf16.mxu0 0
        %520 = vmatpush1.bf16.msra.mxu0 0
        %521 = vmatprep.subr.bf16.mxu0 0
        %522 = vmatpush1.bf16.msra.mxu0 %v505
        %523 = vmatprep.subr.bf16.mxu0 0
        %524 = vmatpush2.bf16.msra.mxu0 0
        %525 = vmatprep.subr.bf16.mxu0 0
        %526 = vmatpush2.bf16.msra.mxu0 0
        %527 = vmatprep.subr.bf16.mxu0 0
        %528 = vmatpush2.bf16.msra.mxu0 0
        %529 = vmatprep.subr.bf16.mxu0 0
        %530 = vmatpush2.bf16.msra.mxu0 0
        %531 = vmatprep.subr.bf16.mxu0 0
        %532 = vmatpush2.bf16.msra.mxu0 0
        %533 = vmatprep.subr.bf16.mxu0 0
        %534 = vmatpush2.bf16.msra.mxu0 0
        %535 = vmatprep.subr.bf16.mxu0 0
        %536 = vmatpush2.bf16.msra.mxu0 0
        %537 = vmatprep.subr.bf16.mxu0 0
        %538 = vmatpush2.bf16.msra.mxu0 0
        %539 = vmatprep.mubr.bf16.mxu0 0
        %540 = vmatmul.mubr.bf16.gmra.mxu0 %v477
        %v541 = vpop.f32.mrf.mxu0
        %v542 = vadd.f32 0.0, %v541
        %v543 = vpop.f32.mrf.mxu0
        %v544 = vpop.f32.mrf.mxu0
        %v545 = vadd.f32 0.0, %v544
        %v546 = vpop.f32.mrf.mxu0
        %547 = vmatprep.mubr.bf16.mxu0 0
        %548 = vmatmul.mubr.bf16.gmra.mxu0 %v480
        %v549 = vpop.f32.mrf.mxu0
        %v550 = vadd.f32 0.0, %v549
        %v551 = vpop.f32.mrf.mxu0
        %v552 = vpop.f32.mrf.mxu0
        %v553 = vadd.f32 0.0, %v552
        %v554 = vpop.f32.mrf.mxu0
        %555 = vmatprep.mubr.bf16.mxu0 0
        %556 = vmatmul.mubr.bf16.gmra.mxu0 %v483
        %v557 = vpop.f32.mrf.mxu0
        %v558 = vadd.f32 0.0, %v557
        %v559 = vpop.f32.mrf.mxu0
        %v560 = vpop.f32.mrf.mxu0
        %v561 = vadd.f32 0.0, %v560
        %v562 = vpop.f32.mrf.mxu0
        %563 = vmatprep.mubr.bf16.mxu0 0
        %564 = vmatmul.mubr.bf16.gmra.mxu0 %v486
        %v565 = vpop.f32.mrf.mxu0
        %v566 = vadd.f32 0.0, %v565
        %v567 = vpop.f32.mrf.mxu0
        %v568 = vpop.f32.mrf.mxu0
        %v569 = vadd.f32 0.0, %v568
        %v570 = vpop.f32.mrf.mxu0
        %571 = vmatprep.mubr.bf16.mxu0 0
        %572 = vmatmul.mubr.bf16.gmra.mxu0 %v489
        %v573 = vpop.f32.mrf.mxu0
        %v574 = vadd.f32 0.0, %v573
        %v575 = vpop.f32.mrf.mxu0
        %v576 = vpop.f32.mrf.mxu0
        %v577 = vadd.f32 0.0, %v576
        %v578 = vpop.f32.mrf.mxu0
        %579 = vmatprep.mubr.bf16.mxu0 0
        %580 = vmatmul.mubr.bf16.gmra.mxu0 %v492
        %v581 = vpop.f32.mrf.mxu0
        %v582 = vadd.f32 0.0, %v581
        %v583 = vpop.f32.mrf.mxu0
        %v584 = vpop.f32.mrf.mxu0
        %v585 = vadd.f32 0.0, %v584
        %v586 = vpop.f32.mrf.mxu0
        %587 = vmatprep.mubr.bf16.mxu0 0
        %588 = vmatmul.mubr.bf16.gmra.mxu0 %v495
        %v589 = vpop.f32.mrf.mxu0
        %v590 = vadd.f32 0.0, %v589
        %v591 = vpop.f32.mrf.mxu0
        %v592 = vpop.f32.mrf.mxu0
        %v593 = vadd.f32 0.0, %v592
        %v594 = vpop.f32.mrf.mxu0
        %595 = vmatprep.mubr.bf16.mxu0 0
        %596 = vmatmul.mubr.bf16.gmra.mxu0 %v498
        %v597 = vpop.f32.mrf.mxu0
        %v598 = vadd.f32 0.0, %v597
        %v599 = vpop.f32.mrf.mxu0
        %v600 = vpop.f32.mrf.mxu0
        %v601 = vadd.f32 0.0, %v600
        %v602 = vpop.f32.mrf.mxu0
        %603 = vdwg.mxu0
        %v620 = vunpack.c.l.b16 %v229
        %v621 = vunpack.c.l.b16 %v230
        %v622 = vunpack.c.l.b16 %v231
        %v623 = vunpack.c.l.b16 %v232
        %v624 = vunpack.c.l.b16 %v233
        %v625 = vunpack.c.l.b16 %v234
        %v626 = vunpack.c.l.b16 %v235
        %v627 = vunpack.c.l.b16 %v236
        %v628 = vunpack.c.l.b16 %v237
        %v629 = vunpack.c.l.b16 %v238
        %v630 = vunpack.c.l.b16 %v239
        %v631 = vunpack.c.l.b16 %v240
        %v632 = vunpack.c.l.b16 %v241
        %v633 = vunpack.c.l.b16 %v242
        %v634 = vunpack.c.l.b16 %v243
        %v635 = vunpack.c.l.b16 %v244
        %v636 = vpack.c.b16 %v621, %v620
        %v637 = vpack.c.b16 %v623, %v622
        %v638 = vpack.c.b16 %v625, %v624
        %v639 = vpack.c.b16 %v627, %v626
        %v640 = vpack.c.b16 %v629, %v628
        %v641 = vpack.c.b16 %v631, %v630
        %v642 = vpack.c.b16 %v633, %v632
        %v643 = vpack.c.b16 %v635, %v634
        %v645 = vsel %vm475, %v636, 0
        %v648 = vsel %vm475, %v637, 0
        %v651 = vsel %vm475, %v638, 0
        %v654 = vsel %vm475, %v639, 0
        %v657 = vsel %vm475, %v640, 0
        %v660 = vsel %vm475, %v641, 0
        %v663 = vsel %vm475, %v642, 0
        %v666 = vsel %vm475, %v643, 0
        %v669 = vand.u32 %v245, %v503
        %671 = vmatprep.subr.bf16.mxu0 0
        %672 = vmatpush1.bf16.msra.mxu0 0
        %673 = vmatprep.subr.bf16.mxu0 0
        %674 = vmatpush1.bf16.msra.mxu0 0
        %675 = vmatprep.subr.bf16.mxu0 0
        %676 = vmatpush1.bf16.msra.mxu0 0
        %677 = vmatprep.subr.bf16.mxu0 0
        %678 = vmatpush1.bf16.msra.mxu0 0
        %679 = vmatprep.subr.bf16.mxu0 0
        %680 = vmatpush1.bf16.msra.mxu0 0
        %681 = vmatprep.subr.bf16.mxu0 0
        %682 = vmatpush1.bf16.msra.mxu0 0
        %683 = vmatprep.subr.bf16.mxu0 0
        %684 = vmatpush1.bf16.msra.mxu0 0
        %685 = vmatprep.subr.bf16.mxu0 0
        %686 = vmatpush1.bf16.msra.mxu0 %v669
        %687 = vmatprep.subr.bf16.mxu0 0
        %688 = vmatpush2.bf16.msra.mxu0 0
        %689 = vmatprep.subr.bf16.mxu0 0
        %690 = vmatpush2.bf16.msra.mxu0 0
        %691 = vmatprep.subr.bf16.mxu0 0
        %692 = vmatpush2.bf16.msra.mxu0 0
        %693 = vmatprep.subr.bf16.mxu0 0
        %694 = vmatpush2.bf16.msra.mxu0 0
        %695 = vmatprep.subr.bf16.mxu0 0
        %696 = vmatpush2.bf16.msra.mxu0 0
        %697 = vmatprep.subr.bf16.mxu0 0
        %698 = vmatpush2.bf16.msra.mxu0 0
        %699 = vmatprep.subr.bf16.mxu0 0
        %700 = vmatpush2.bf16.msra.mxu0 0
        %701 = vmatprep.subr.bf16.mxu0 0
        %702 = vmatpush2.bf16.msra.mxu0 0
        %703 = vmatprep.mubr.bf16.mxu0 0
        %704 = vmatmul.mubr.bf16.gmra.mxu0 %v645
        %v705 = vpop.f32.mrf.mxu0
        %v706 = vadd.f32 %v542, %v705
        %v707 = vpop.f32.mrf.mxu0
        %v708 = vpop.f32.mrf.mxu0
        %v709 = vadd.f32 %v545, %v708
        %v710 = vpop.f32.mrf.mxu0
        %711 = vmatprep.mubr.bf16.mxu0 0
        %712 = vmatmul.mubr.bf16.gmra.mxu0 %v648
        %v713 = vpop.f32.mrf.mxu0
        %v714 = vadd.f32 %v550, %v713
        %v715 = vpop.f32.mrf.mxu0
        %v716 = vpop.f32.mrf.mxu0
        %v717 = vadd.f32 %v553, %v716
        %v718 = vpop.f32.mrf.mxu0
        %719 = vmatprep.mubr.bf16.mxu0 0
        %720 = vmatmul.mubr.bf16.gmra.mxu0 %v651
        %v721 = vpop.f32.mrf.mxu0
        %v722 = vadd.f32 %v558, %v721
        %v723 = vpop.f32.mrf.mxu0
        %v724 = vpop.f32.mrf.mxu0
        %v725 = vadd.f32 %v561, %v724
        %v726 = vpop.f32.mrf.mxu0
        %727 = vmatprep.mubr.bf16.mxu0 0
        %728 = vmatmul.mubr.bf16.gmra.mxu0 %v654
        %v729 = vpop.f32.mrf.mxu0
        %v730 = vadd.f32 %v566, %v729
        %v731 = vpop.f32.mrf.mxu0
        %v732 = vpop.f32.mrf.mxu0
        %v733 = vadd.f32 %v569, %v732
        %v734 = vpop.f32.mrf.mxu0
        %735 = vmatprep.mubr.bf16.mxu0 0
        %736 = vmatmul.mubr.bf16.gmra.mxu0 %v657
        %v737 = vpop.f32.mrf.mxu0
        %v738 = vadd.f32 %v574, %v737
        %v739 = vpop.f32.mrf.mxu0
        %v740 = vpop.f32.mrf.mxu0
        %v741 = vadd.f32 %v577, %v740
        %v742 = vpop.f32.mrf.mxu0
        %743 = vmatprep.mubr.bf16.mxu0 0
        %744 = vmatmul.mubr.bf16.gmra.mxu0 %v660
        %v745 = vpop.f32.mrf.mxu0
        %v746 = vadd.f32 %v582, %v745
        %v747 = vpop.f32.mrf.mxu0
        %v748 = vpop.f32.mrf.mxu0
        %v749 = vadd.f32 %v585, %v748
        %v750 = vpop.f32.mrf.mxu0
        %751 = vmatprep.mubr.bf16.mxu0 0
        %752 = vmatmul.mubr.bf16.gmra.mxu0 %v663
        %v753 = vpop.f32.mrf.mxu0
        %v754 = vadd.f32 %v590, %v753
        %v755 = vpop.f32.mrf.mxu0
        %v756 = vpop.f32.mrf.mxu0
        %v757 = vadd.f32 %v593, %v756
        %v758 = vpop.f32.mrf.mxu0
        %759 = vmatprep.mubr.bf16.mxu0 0
        %760 = vmatmul.mubr.bf16.gmra.mxu0 %v666
        %v761 = vpop.f32.mrf.mxu0
        %v762 = vadd.f32 %v598, %v761
        %v763 = vpop.f32.mrf.mxu0
        %v764 = vpop.f32.mrf.mxu0
        %v765 = vadd.f32 %v601, %v764
        %v766 = vpop.f32.mrf.mxu0
        %767 = vdwg.mxu0
        %v768 = vld [vmem:[%s228] sm:$0xe]
        %v769 = vld [vmem:[%s228 + $0xc] sm:$0xe]
        %v770 = vld [vmem:[%s228 + $0x18] sm:$0xe]
        %v771 = vld [vmem:[%s228 + $0x24] sm:$0xe]
        %v772 = vld [vmem:[%s228 + $0x30] sm:$0xe]
        %v773 = vld [vmem:[%s228 + $0x3c] sm:$0xe]
        %v774 = vld [vmem:[%s228 + $0x48] sm:$0xe]
        %v775 = vld [vmem:[%s228 + $0x54] sm:$0xe]
        %vm792 = vcmask 1042432
        %vm793 = vcmask 1046532
        %vm794 = vmor %vm792, %vm793
        %v795 = vrot.slane %v768, 5
        %v796 = vrot.slane %v795, 4
        %v797 = vrot.slane %v230, 5
        %v798 = vsel %vm794, %v796, %v797
        %v799 = vrot.slane %v797, 4
        %v800 = vrot.slane %v246, 5
        %v801 = vsel %vm794, %v799, %v800
        %v802 = vrot.slane %v769, 5
        %v803 = vrot.slane %v802, 4
        %v804 = vrot.slane %v232, 5
        %v805 = vsel %vm794, %v803, %v804
        %v806 = vrot.slane %v804, 4
        %v807 = vrot.slane %v247, 5
        %v808 = vsel %vm794, %v806, %v807
        %v809 = vrot.slane %v770, 5
        %v810 = vrot.slane %v809, 4
        %v811 = vrot.slane %v234, 5
        %v812 = vsel %vm794, %v810, %v811
        %v813 = vrot.slane %v811, 4
        %v814 = vrot.slane %v248, 5
        %v815 = vsel %vm794, %v813, %v814
        %v816 = vrot.slane %v771, 5
        %v817 = vrot.slane %v816, 4
        %v818 = vrot.slane %v236, 5
        %v819 = vsel %vm794, %v817, %v818
        %v820 = vrot.slane %v818, 4
        %v821 = vrot.slane %v249, 5
        %v822 = vsel %vm794, %v820, %v821
        %v823 = vrot.slane %v772, 5
        %v824 = vrot.slane %v823, 4
        %v825 = vrot.slane %v238, 5
        %v826 = vsel %vm794, %v824, %v825
        %v827 = vrot.slane %v825, 4
        %v828 = vrot.slane %v250, 5
        %v829 = vsel %vm794, %v827, %v828
        %v830 = vrot.slane %v773, 5
        %v831 = vrot.slane %v830, 4
        %v832 = vrot.slane %v240, 5
        %v833 = vsel %vm794, %v831, %v832
        %v834 = vrot.slane %v832, 4
        %v835 = vrot.slane %v251, 5
        %v836 = vsel %vm794, %v834, %v835
        %v837 = vrot.slane %v774, 5
        %v838 = vrot.slane %v837, 4
        %v839 = vrot.slane %v242, 5
        %v840 = vsel %vm794, %v838, %v839
        %v841 = vrot.slane %v839, 4
        %v842 = vrot.slane %v252, 5
        %v843 = vsel %vm794, %v841, %v842
        %v844 = vrot.slane %v775, 5
        %v845 = vrot.slane %v844, 4
        %v846 = vrot.slane %v244, 5
        %v847 = vsel %vm794, %v845, %v846
        %v848 = vrot.slane %v846, 4
        %v849 = vrot.slane %v253, 5
        %v850 = vsel %vm794, %v848, %v849
        %s851 = scalar_lea.vmem %s219, 4
        %v852 = vld [vmem:[%s851] sm:$0x3]
        %v853 = vunpack.c.l.b16 %v798
        %v854 = vunpack.c.l.b16 %v801
        %v855 = vunpack.c.l.b16 %v805
        %v856 = vunpack.c.l.b16 %v808
        %v857 = vunpack.c.l.b16 %v812
        %v858 = vunpack.c.l.b16 %v815
        %v859 = vunpack.c.l.b16 %v819
        %v860 = vunpack.c.l.b16 %v822
        %v861 = vunpack.c.l.b16 %v826
        %v862 = vunpack.c.l.b16 %v829
        %v863 = vunpack.c.l.b16 %v833
        %v864 = vunpack.c.l.b16 %v836
        %v865 = vunpack.c.l.b16 %v840
        %v866 = vunpack.c.l.b16 %v843
        %v867 = vunpack.c.l.b16 %v847
        %v868 = vunpack.c.l.b16 %v850
        %v869 = vpack.c.b16 %v854, %v853
        %v870 = vpack.c.b16 %v856, %v855
        %v871 = vpack.c.b16 %v858, %v857
        %v872 = vpack.c.b16 %v860, %v859
        %v873 = vpack.c.b16 %v862, %v861
        %v874 = vpack.c.b16 %v864, %v863
        %v875 = vpack.c.b16 %v866, %v865
        %v876 = vpack.c.b16 %v868, %v867
        %v878 = vsel %vm475, %v869, 0
        %v881 = vsel %vm475, %v870, 0
        %v884 = vsel %vm475, %v871, 0
        %v887 = vsel %vm475, %v872, 0
        %v890 = vsel %vm475, %v873, 0
        %v893 = vsel %vm475, %v874, 0
        %v896 = vsel %vm475, %v875, 0
        %v899 = vsel %vm475, %v876, 0
        %v902 = vand.u32 %v852, %v503
        %904 = vmatprep.subr.bf16.mxu0 0
        %905 = vmatpush1.bf16.msra.mxu0 0
        %906 = vmatprep.subr.bf16.mxu0 0
        %907 = vmatpush1.bf16.msra.mxu0 0
        %908 = vmatprep.subr.bf16.mxu0 0
        %909 = vmatpush1.bf16.msra.mxu0 0
        %910 = vmatprep.subr.bf16.mxu0 0
        %911 = vmatpush1.bf16.msra.mxu0 0
        %912 = vmatprep.subr.bf16.mxu0 0
        %913 = vmatpush1.bf16.msra.mxu0 0
        %914 = vmatprep.subr.bf16.mxu0 0
        %915 = vmatpush1.bf16.msra.mxu0 0
        %916 = vmatprep.subr.bf16.mxu0 0
        %917 = vmatpush1.bf16.msra.mxu0 0
        %918 = vmatprep.subr.bf16.mxu0 0
        %919 = vmatpush1.bf16.msra.mxu0 %v902
        %920 = vmatprep.subr.bf16.mxu0 0
        %921 = vmatpush2.bf16.msra.mxu0 0
        %922 = vmatprep.subr.bf16.mxu0 0
        %923 = vmatpush2.bf16.msra.mxu0 0
        %924 = vmatprep.subr.bf16.mxu0 0
        %925 = vmatpush2.bf16.msra.mxu0 0
        %926 = vmatprep.subr.bf16.mxu0 0
        %927 = vmatpush2.bf16.msra.mxu0 0
        %928 = vmatprep.subr.bf16.mxu0 0
        %929 = vmatpush2.bf16.msra.mxu0 0
        %930 = vmatprep.subr.bf16.mxu0 0
        %931 = vmatpush2.bf16.msra.mxu0 0
        %932 = vmatprep.subr.bf16.mxu0 0
        %933 = vmatpush2.bf16.msra.mxu0 0
        %934 = vmatprep.subr.bf16.mxu0 0
        %935 = vmatpush2.bf16.msra.mxu0 0
        %936 = vmatprep.mubr.bf16.mxu0 0
        %937 = vmatmul.mubr.bf16.gmra.mxu0 %v878
        %v938 = vpop.f32.mrf.mxu0
        %v939 = vadd.f32 0.0, %v938
        %v940 = vpop.f32.mrf.mxu0
        %v941 = vpop.f32.mrf.mxu0
        %v942 = vadd.f32 0.0, %v941
        %v943 = vpop.f32.mrf.mxu0
        %944 = vmatprep.mubr.bf16.mxu0 0
        %945 = vmatmul.mubr.bf16.gmra.mxu0 %v881
        %v946 = vpop.f32.mrf.mxu0
        %v947 = vadd.f32 0.0, %v946
        %v948 = vpop.f32.mrf.mxu0
        %v949 = vpop.f32.mrf.mxu0
        %v950 = vadd.f32 0.0, %v949
        %v951 = vpop.f32.mrf.mxu0
        %952 = vmatprep.mubr.bf16.mxu0 0
        %953 = vmatmul.mubr.bf16.gmra.mxu0 %v884
        %v954 = vpop.f32.mrf.mxu0
        %v955 = vadd.f32 0.0, %v954
        %v956 = vpop.f32.mrf.mxu0
        %v957 = vpop.f32.mrf.mxu0
        %v958 = vadd.f32 0.0, %v957
        %v959 = vpop.f32.mrf.mxu0
        %960 = vmatprep.mubr.bf16.mxu0 0
        %961 = vmatmul.mubr.bf16.gmra.mxu0 %v887
        %v962 = vpop.f32.mrf.mxu0
        %v963 = vadd.f32 0.0, %v962
        %v964 = vpop.f32.mrf.mxu0
        %v965 = vpop.f32.mrf.mxu0
        %v966 = vadd.f32 0.0, %v965
        %v967 = vpop.f32.mrf.mxu0
        %968 = vmatprep.mubr.bf16.mxu0 0
        %969 = vmatmul.mubr.bf16.gmra.mxu0 %v890
        %v970 = vpop.f32.mrf.mxu0
        %v971 = vadd.f32 0.0, %v970
        %v972 = vpop.f32.mrf.mxu0
        %v973 = vpop.f32.mrf.mxu0
        %v974 = vadd.f32 0.0, %v973
        %v975 = vpop.f32.mrf.mxu0
        %976 = vmatprep.mubr.bf16.mxu0 0
        %977 = vmatmul.mubr.bf16.gmra.mxu0 %v893
        %v978 = vpop.f32.mrf.mxu0
        %v979 = vadd.f32 0.0, %v978
        %v980 = vpop.f32.mrf.mxu0
        %v981 = vpop.f32.mrf.mxu0
        %v982 = vadd.f32 0.0, %v981
        %v983 = vpop.f32.mrf.mxu0
        %984 = vmatprep.mubr.bf16.mxu0 0
        %985 = vmatmul.mubr.bf16.gmra.mxu0 %v896
        %v986 = vpop.f32.mrf.mxu0
        %v987 = vadd.f32 0.0, %v986
        %v988 = vpop.f32.mrf.mxu0
        %v989 = vpop.f32.mrf.mxu0
        %v990 = vadd.f32 0.0, %v989
        %v991 = vpop.f32.mrf.mxu0
        %992 = vmatprep.mubr.bf16.mxu0 0
        %993 = vmatmul.mubr.bf16.gmra.mxu0 %v899
        %v994 = vpop.f32.mrf.mxu0
        %v995 = vadd.f32 0.0, %v994
        %v996 = vpop.f32.mrf.mxu0
        %v997 = vpop.f32.mrf.mxu0
        %v998 = vadd.f32 0.0, %v997
        %v999 = vpop.f32.mrf.mxu0
        %1000 = vdwg.mxu0
        %v1001 = vadd.f32 %v706, %v939
        %v1002 = vadd.f32 %v709, %v942
        %v1003 = vadd.f32 %v714, %v947
        %v1004 = vadd.f32 %v717, %v950
        %v1005 = vadd.f32 %v722, %v955
        %v1006 = vadd.f32 %v725, %v958
        %v1007 = vadd.f32 %v730, %v963
        %v1008 = vadd.f32 %v733, %v966
        %v1009 = vadd.f32 %v738, %v971
        %v1010 = vadd.f32 %v741, %v974
        %v1011 = vadd.f32 %v746, %v979
        %v1012 = vadd.f32 %v749, %v982
        %v1013 = vadd.f32 %v754, %v987
        %v1014 = vadd.f32 %v757, %v990
        %v1015 = vadd.f32 %v762, %v995
        %v1016 = vadd.f32 %v765, %v998
        %s1017 = sadd.s32 %s225, 1
        %s1018 = smul.u32 %s1017, 3
        %s1019 = smul.addr %s1018, 4
        %s1020 = scalar_lea.vmem %s215, %s1019
        %v1021 = vld [vmem:[%s1020] sm:$0xf]
        %v1022 = vld [vmem:[%s1020 + $0x4] sm:$0xf]
        %v1023 = vld [vmem:[%s1020 + $0xc] sm:$0xf]
        %v1024 = vld [vmem:[%s1020 + $0x10] sm:$0xf]
        %v1025 = vld [vmem:[%s1020 + $0x18] sm:$0xf]
        %v1026 = vld [vmem:[%s1020 + $0x1c] sm:$0xf]
        %v1027 = vld [vmem:[%s1020 + $0x24] sm:$0xf]
        %v1028 = vld [vmem:[%s1020 + $0x28] sm:$0xf]
        %v1029 = vld [vmem:[%s1020 + $0x30] sm:$0xf]
        %v1030 = vld [vmem:[%s1020 + $0x34] sm:$0xf]
        %v1031 = vld [vmem:[%s1020 + $0x3c] sm:$0xf]
        %v1032 = vld [vmem:[%s1020 + $0x40] sm:$0xf]
        %v1033 = vld [vmem:[%s1020 + $0x48] sm:$0xf]
        %v1034 = vld [vmem:[%s1020 + $0x4c] sm:$0xf]
        %v1035 = vld [vmem:[%s1020 + $0x54] sm:$0xf]
        %v1036 = vld [vmem:[%s1020 + $0x58] sm:$0xf]
        %s1037 = scalar_lea.vmem %s219, 6
        %v1038 = vld [vmem:[%s1037] sm:$0x3]
        %v1055 = vunpack.c.l.b16 %v1021
        %v1056 = vunpack.c.l.b16 %v1022
        %v1057 = vunpack.c.l.b16 %v1023
        %v1058 = vunpack.c.l.b16 %v1024
        %v1059 = vunpack.c.l.b16 %v1025
        %v1060 = vunpack.c.l.b16 %v1026
        %v1061 = vunpack.c.l.b16 %v1027
        %v1062 = vunpack.c.l.b16 %v1028
        %v1063 = vunpack.c.l.b16 %v1029
        %v1064 = vunpack.c.l.b16 %v1030
        %v1065 = vunpack.c.l.b16 %v1031
        %v1066 = vunpack.c.l.b16 %v1032
        %v1067 = vunpack.c.l.b16 %v1033
        %v1068 = vunpack.c.l.b16 %v1034
        %v1069 = vunpack.c.l.b16 %v1035
        %v1070 = vunpack.c.l.b16 %v1036
        %v1071 = vpack.c.b16 %v1056, %v1055
        %v1072 = vpack.c.b16 %v1058, %v1057
        %v1073 = vpack.c.b16 %v1060, %v1059
        %v1074 = vpack.c.b16 %v1062, %v1061
        %v1075 = vpack.c.b16 %v1064, %v1063
        %v1076 = vpack.c.b16 %v1066, %v1065
        %v1077 = vpack.c.b16 %v1068, %v1067
        %v1078 = vpack.c.b16 %v1070, %v1069
        %v1080 = vsel %vm475, %v1071, 0
        %v1083 = vsel %vm475, %v1072, 0
        %v1086 = vsel %vm475, %v1073, 0
        %v1089 = vsel %vm475, %v1074, 0
        %v1092 = vsel %vm475, %v1075, 0
        %v1095 = vsel %vm475, %v1076, 0
        %v1098 = vsel %vm475, %v1077, 0
        %v1101 = vsel %vm475, %v1078, 0
        %v1104 = vand.u32 %v1038, %v503
        %1106 = vmatprep.subr.bf16.mxu0 0
        %1107 = vmatpush1.bf16.msra.mxu0 0
        %1108 = vmatprep.subr.bf16.mxu0 0
        %1109 = vmatpush1.bf16.msra.mxu0 0
        %1110 = vmatprep.subr.bf16.mxu0 0
        %1111 = vmatpush1.bf16.msra.mxu0 0
        %1112 = vmatprep.subr.bf16.mxu0 0
        %1113 = vmatpush1.bf16.msra.mxu0 0
        %1114 = vmatprep.subr.bf16.mxu0 0
        %1115 = vmatpush1.bf16.msra.mxu0 0
        %1116 = vmatprep.subr.bf16.mxu0 0
        %1117 = vmatpush1.bf16.msra.mxu0 0
        %1118 = vmatprep.subr.bf16.mxu0 0
        %1119 = vmatpush1.bf16.msra.mxu0 0
        %1120 = vmatprep.subr.bf16.mxu0 0
        %1121 = vmatpush1.bf16.msra.mxu0 %v1104
        %1122 = vmatprep.subr.bf16.mxu0 0
        %1123 = vmatpush2.bf16.msra.mxu0 0
        %1124 = vmatprep.subr.bf16.mxu0 0
        %1125 = vmatpush2.bf16.msra.mxu0 0
        %1126 = vmatprep.subr.bf16.mxu0 0
        %1127 = vmatpush2.bf16.msra.mxu0 0
        %1128 = vmatprep.subr.bf16.mxu0 0
        %1129 = vmatpush2.bf16.msra.mxu0 0
        %1130 = vmatprep.subr.bf16.mxu0 0
        %1131 = vmatpush2.bf16.msra.mxu0 0
        %1132 = vmatprep.subr.bf16.mxu0 0
        %1133 = vmatpush2.bf16.msra.mxu0 0
        %1134 = vmatprep.subr.bf16.mxu0 0
        %1135 = vmatpush2.bf16.msra.mxu0 0
        %1136 = vmatprep.subr.bf16.mxu0 0
        %1137 = vmatpush2.bf16.msra.mxu0 0
        %1138 = vmatprep.mubr.bf16.mxu0 0
        %1139 = vmatmul.mubr.bf16.gmra.mxu0 %v1080
        %v1140 = vpop.f32.mrf.mxu0
        %v1141 = vadd.f32 0.0, %v1140
        %v1142 = vpop.f32.mrf.mxu0
        %v1143 = vpop.f32.mrf.mxu0
        %v1144 = vadd.f32 0.0, %v1143
        %v1145 = vpop.f32.mrf.mxu0
        %1146 = vmatprep.mubr.bf16.mxu0 0
        %1147 = vmatmul.mubr.bf16.gmra.mxu0 %v1083
        %v1148 = vpop.f32.mrf.mxu0
        %v1149 = vadd.f32 0.0, %v1148
        %v1150 = vpop.f32.mrf.mxu0
        %v1151 = vpop.f32.mrf.mxu0
        %v1152 = vadd.f32 0.0, %v1151
        %v1153 = vpop.f32.mrf.mxu0
        %1154 = vmatprep.mubr.bf16.mxu0 0
        %1155 = vmatmul.mubr.bf16.gmra.mxu0 %v1086
        %v1156 = vpop.f32.mrf.mxu0
        %v1157 = vadd.f32 0.0, %v1156
        %v1158 = vpop.f32.mrf.mxu0
        %v1159 = vpop.f32.mrf.mxu0
        %v1160 = vadd.f32 0.0, %v1159
        %v1161 = vpop.f32.mrf.mxu0
        %1162 = vmatprep.mubr.bf16.mxu0 0
        %1163 = vmatmul.mubr.bf16.gmra.mxu0 %v1089
        %v1164 = vpop.f32.mrf.mxu0
        %v1165 = vadd.f32 0.0, %v1164
        %v1166 = vpop.f32.mrf.mxu0
        %v1167 = vpop.f32.mrf.mxu0
        %v1168 = vadd.f32 0.0, %v1167
        %v1169 = vpop.f32.mrf.mxu0
        %1170 = vmatprep.mubr.bf16.mxu0 0
        %1171 = vmatmul.mubr.bf16.gmra.mxu0 %v1092
        %v1172 = vpop.f32.mrf.mxu0
        %v1173 = vadd.f32 0.0, %v1172
        %v1174 = vpop.f32.mrf.mxu0
        %v1175 = vpop.f32.mrf.mxu0
        %v1176 = vadd.f32 0.0, %v1175
        %v1177 = vpop.f32.mrf.mxu0
        %1178 = vmatprep.mubr.bf16.mxu0 0
        %1179 = vmatmul.mubr.bf16.gmra.mxu0 %v1095
        %v1180 = vpop.f32.mrf.mxu0
        %v1181 = vadd.f32 0.0, %v1180
        %v1182 = vpop.f32.mrf.mxu0
        %v1183 = vpop.f32.mrf.mxu0
        %v1184 = vadd.f32 0.0, %v1183
        %v1185 = vpop.f32.mrf.mxu0
        %1186 = vmatprep.mubr.bf16.mxu0 0
        %1187 = vmatmul.mubr.bf16.gmra.mxu0 %v1098
        %v1188 = vpop.f32.mrf.mxu0
        %v1189 = vadd.f32 0.0, %v1188
        %v1190 = vpop.f32.mrf.mxu0
        %v1191 = vpop.f32.mrf.mxu0
        %v1192 = vadd.f32 0.0, %v1191
        %v1193 = vpop.f32.mrf.mxu0
        %1194 = vmatprep.mubr.bf16.mxu0 0
        %1195 = vmatmul.mubr.bf16.gmra.mxu0 %v1101
        %v1196 = vpop.f32.mrf.mxu0
        %v1197 = vadd.f32 0.0, %v1196
        %v1198 = vpop.f32.mrf.mxu0
        %v1199 = vpop.f32.mrf.mxu0
        %v1200 = vadd.f32 0.0, %v1199
        %v1201 = vpop.f32.mrf.mxu0
        %1202 = vdwg.mxu0
        %v1203 = vadd.f32 %v1001, %v1141
        %v1204 = vadd.f32 %v1002, %v1144
        %v1205 = vadd.f32 %v1003, %v1149
        %v1206 = vadd.f32 %v1004, %v1152
        %v1207 = vadd.f32 %v1005, %v1157
        %v1208 = vadd.f32 %v1006, %v1160
        %v1209 = vadd.f32 %v1007, %v1165
        %v1210 = vadd.f32 %v1008, %v1168
        %v1211 = vadd.f32 %v1009, %v1173
        %v1212 = vadd.f32 %v1010, %v1176
        %v1213 = vadd.f32 %v1011, %v1181
        %v1214 = vadd.f32 %v1012, %v1184
        %v1215 = vadd.f32 %v1013, %v1189
        %v1216 = vadd.f32 %v1014, %v1192
        %v1217 = vadd.f32 %v1015, %v1197
        %v1218 = vadd.f32 %v1016, %v1200
        %v1219 = vld [vmem:[%s1020] sm:$0xf]
        %v1220 = vld [vmem:[%s1020 + $0x4] sm:$0xf]
        %v1221 = vld [vmem:[%s1020 + $0x8] sm:$0x1]
        %v1222 = vld [vmem:[%s1020 + $0xc] sm:$0xf]
        %v1223 = vld [vmem:[%s1020 + $0x10] sm:$0xf]
        %v1224 = vld [vmem:[%s1020 + $0x14] sm:$0x1]
        %v1225 = vld [vmem:[%s1020 + $0x18] sm:$0xf]
        %v1226 = vld [vmem:[%s1020 + $0x1c] sm:$0xf]
        %v1227 = vld [vmem:[%s1020 + $0x20] sm:$0x1]
        %v1228 = vld [vmem:[%s1020 + $0x24] sm:$0xf]
        %v1229 = vld [vmem:[%s1020 + $0x28] sm:$0xf]
        %v1230 = vld [vmem:[%s1020 + $0x2c] sm:$0x1]
        %v1231 = vld [vmem:[%s1020 + $0x30] sm:$0xf]
        %v1232 = vld [vmem:[%s1020 + $0x34] sm:$0xf]
        %v1233 = vld [vmem:[%s1020 + $0x38] sm:$0x1]
        %v1234 = vld [vmem:[%s1020 + $0x3c] sm:$0xf]
        %v1235 = vld [vmem:[%s1020 + $0x40] sm:$0xf]
        %v1236 = vld [vmem:[%s1020 + $0x44] sm:$0x1]
        %v1237 = vld [vmem:[%s1020 + $0x48] sm:$0xf]
        %v1238 = vld [vmem:[%s1020 + $0x4c] sm:$0xf]
        %v1239 = vld [vmem:[%s1020 + $0x50] sm:$0x1]
        %v1240 = vld [vmem:[%s1020 + $0x54] sm:$0xf]
        %v1241 = vld [vmem:[%s1020 + $0x58] sm:$0xf]
        %v1242 = vld [vmem:[%s1020 + $0x5c] sm:$0x1]
        %v1244 = vshrl.u32 %v1219, 16
        %v1246 = vrot.slane %v1244, 4
        %v1247 = vshll.u32 %v1219, 16
        %v1249 = vrot.slane %v1247, 5
        %v1250 = vor.u32 %v1246, %v1249
        %v1251 = vrot.slane %v1250, 4
        %v1253 = vshll.u32 %v1220, 16
        %v1255 = vrot.slane %v1253, 5
        %v1256 = vsel %vm256, %v1251, %v1255
        %v1257 = vshrl.u32 %v1220, 16
        %v1259 = vrot.slane %v1257, 4
        %v1260 = vor.u32 %v1259, %v1255
        %v1261 = vrot.slane %v1260, 4
        %v1263 = vshll.u32 %v1221, 16
        %v1265 = vrot.slane %v1263, 5
        %v1266 = vsel %vm256, %v1261, %v1265
        %v1268 = vshrl.u32 %v1222, 16
        %v1270 = vrot.slane %v1268, 4
        %v1271 = vshll.u32 %v1222, 16
        %v1273 = vrot.slane %v1271, 5
        %v1274 = vor.u32 %v1270, %v1273
        %v1275 = vrot.slane %v1274, 4
        %v1277 = vshll.u32 %v1223, 16
        %v1279 = vrot.slane %v1277, 5
        %v1280 = vsel %vm256, %v1275, %v1279
        %v1281 = vshrl.u32 %v1223, 16
        %v1283 = vrot.slane %v1281, 4
        %v1284 = vor.u32 %v1283, %v1279
        %v1285 = vrot.slane %v1284, 4
        %v1287 = vshll.u32 %v1224, 16
        %v1289 = vrot.slane %v1287, 5
        %v1290 = vsel %vm256, %v1285, %v1289
        %v1292 = vshrl.u32 %v1225, 16
        %v1294 = vrot.slane %v1292, 4
        %v1295 = vshll.u32 %v1225, 16
        %v1297 = vrot.slane %v1295, 5
        %v1298 = vor.u32 %v1294, %v1297
        %v1299 = vrot.slane %v1298, 4
        %v1301 = vshll.u32 %v1226, 16
        %v1303 = vrot.slane %v1301, 5
        %v1304 = vsel %vm256, %v1299, %v1303
        %v1305 = vshrl.u32 %v1226, 16
        %v1307 = vrot.slane %v1305, 4
        %v1308 = vor.u32 %v1307, %v1303
        %v1309 = vrot.slane %v1308, 4
        %v1311 = vshll.u32 %v1227, 16
        %v1313 = vrot.slane %v1311, 5
        %v1314 = vsel %vm256, %v1309, %v1313
        %v1316 = vshrl.u32 %v1228, 16
        %v1318 = vrot.slane %v1316, 4
        %v1319 = vshll.u32 %v1228, 16
        %v1321 = vrot.slane %v1319, 5
        %v1322 = vor.u32 %v1318, %v1321
        %v1323 = vrot.slane %v1322, 4
        %v1325 = vshll.u32 %v1229, 16
        %v1327 = vrot.slane %v1325, 5
        %v1328 = vsel %vm256, %v1323, %v1327
        %v1329 = vshrl.u32 %v1229, 16
        %v1331 = vrot.slane %v1329, 4
        %v1332 = vor.u32 %v1331, %v1327
        %v1333 = vrot.slane %v1332, 4
        %v1335 = vshll.u32 %v1230, 16
        %v1337 = vrot.slane %v1335, 5
        %v1338 = vsel %vm256, %v1333, %v1337
        %v1340 = vshrl.u32 %v1231, 16
        %v1342 = vrot.slane %v1340, 4
        %v1343 = vshll.u32 %v1231, 16
        %v1345 = vrot.slane %v1343, 5
        %v1346 = vor.u32 %v1342, %v1345
        %v1347 = vrot.slane %v1346, 4
        %v1349 = vshll.u32 %v1232, 16
        %v1351 = vrot.slane %v1349, 5
        %v1352 = vsel %vm256, %v1347, %v1351
        %v1353 = vshrl.u32 %v1232, 16
        %v1355 = vrot.slane %v1353, 4
        %v1356 = vor.u32 %v1355, %v1351
        %v1357 = vrot.slane %v1356, 4
        %v1359 = vshll.u32 %v1233, 16
        %v1361 = vrot.slane %v1359, 5
        %v1362 = vsel %vm256, %v1357, %v1361
        %v1364 = vshrl.u32 %v1234, 16
        %v1366 = vrot.slane %v1364, 4
        %v1367 = vshll.u32 %v1234, 16
        %v1369 = vrot.slane %v1367, 5
        %v1370 = vor.u32 %v1366, %v1369
        %v1371 = vrot.slane %v1370, 4
        %v1373 = vshll.u32 %v1235, 16
        %v1375 = vrot.slane %v1373, 5
        %v1376 = vsel %vm256, %v1371, %v1375
        %v1377 = vshrl.u32 %v1235, 16
        %v1379 = vrot.slane %v1377, 4
        %v1380 = vor.u32 %v1379, %v1375
        %v1381 = vrot.slane %v1380, 4
        %v1383 = vshll.u32 %v1236, 16
        %v1385 = vrot.slane %v1383, 5
        %v1386 = vsel %vm256, %v1381, %v1385
        %v1388 = vshrl.u32 %v1237, 16
        %v1390 = vrot.slane %v1388, 4
        %v1391 = vshll.u32 %v1237, 16
        %v1393 = vrot.slane %v1391, 5
        %v1394 = vor.u32 %v1390, %v1393
        %v1395 = vrot.slane %v1394, 4
        %v1397 = vshll.u32 %v1238, 16
        %v1399 = vrot.slane %v1397, 5
        %v1400 = vsel %vm256, %v1395, %v1399
        %v1401 = vshrl.u32 %v1238, 16
        %v1403 = vrot.slane %v1401, 4
        %v1404 = vor.u32 %v1403, %v1399
        %v1405 = vrot.slane %v1404, 4
        %v1407 = vshll.u32 %v1239, 16
        %v1409 = vrot.slane %v1407, 5
        %v1410 = vsel %vm256, %v1405, %v1409
        %v1412 = vshrl.u32 %v1240, 16
        %v1414 = vrot.slane %v1412, 4
        %v1415 = vshll.u32 %v1240, 16
        %v1417 = vrot.slane %v1415, 5
        %v1418 = vor.u32 %v1414, %v1417
        %v1419 = vrot.slane %v1418, 4
        %v1421 = vshll.u32 %v1241, 16
        %v1423 = vrot.slane %v1421, 5
        %v1424 = vsel %vm256, %v1419, %v1423
        %v1425 = vshrl.u32 %v1241, 16
        %v1427 = vrot.slane %v1425, 4
        %v1428 = vor.u32 %v1427, %v1423
        %v1429 = vrot.slane %v1428, 4
        %v1431 = vshll.u32 %v1242, 16
        %v1433 = vrot.slane %v1431, 5
        %v1434 = vsel %vm256, %v1429, %v1433
        %s1435 = scalar_lea.vmem %s219, 8
        %v1436 = vld [vmem:[%s1435] sm:$0x3]
        %v1437 = vunpack.c.l.b16 %v1256
        %v1438 = vunpack.c.l.b16 %v1266
        %v1439 = vunpack.c.l.b16 %v1280
        %v1440 = vunpack.c.l.b16 %v1290
        %v1441 = vunpack.c.l.b16 %v1304
        %v1442 = vunpack.c.l.b16 %v1314
        %v1443 = vunpack.c.l.b16 %v1328
        %v1444 = vunpack.c.l.b16 %v1338
        %v1445 = vunpack.c.l.b16 %v1352
        %v1446 = vunpack.c.l.b16 %v1362
        %v1447 = vunpack.c.l.b16 %v1376
        %v1448 = vunpack.c.l.b16 %v1386
        %v1449 = vunpack.c.l.b16 %v1400
        %v1450 = vunpack.c.l.b16 %v1410
        %v1451 = vunpack.c.l.b16 %v1424
        %v1452 = vunpack.c.l.b16 %v1434
        %v1453 = vpack.c.b16 %v1438, %v1437
        %v1454 = vpack.c.b16 %v1440, %v1439
        %v1455 = vpack.c.b16 %v1442, %v1441
        %v1456 = vpack.c.b16 %v1444, %v1443
        %v1457 = vpack.c.b16 %v1446, %v1445
        %v1458 = vpack.c.b16 %v1448, %v1447
        %v1459 = vpack.c.b16 %v1450, %v1449
        %v1460 = vpack.c.b16 %v1452, %v1451
        %v1462 = vsel %vm475, %v1453, 0
        %v1465 = vsel %vm475, %v1454, 0
        %v1468 = vsel %vm475, %v1455, 0
        %v1471 = vsel %vm475, %v1456, 0
        %v1474 = vsel %vm475, %v1457, 0
        %v1477 = vsel %vm475, %v1458, 0
        %v1480 = vsel %vm475, %v1459, 0
        %v1483 = vsel %vm475, %v1460, 0
        %v1486 = vand.u32 %v1436, %v503
        %1488 = vmatprep.subr.bf16.mxu0 0
        %1489 = vmatpush1.bf16.msra.mxu0 0
        %1490 = vmatprep.subr.bf16.mxu0 0
        %1491 = vmatpush1.bf16.msra.mxu0 0
        %1492 = vmatprep.subr.bf16.mxu0 0
        %1493 = vmatpush1.bf16.msra.mxu0 0
        %1494 = vmatprep.subr.bf16.mxu0 0
        %1495 = vmatpush1.bf16.msra.mxu0 0
        %1496 = vmatprep.subr.bf16.mxu0 0
        %1497 = vmatpush1.bf16.msra.mxu0 0
        %1498 = vmatprep.subr.bf16.mxu0 0
        %1499 = vmatpush1.bf16.msra.mxu0 0
        %1500 = vmatprep.subr.bf16.mxu0 0
        %1501 = vmatpush1.bf16.msra.mxu0 0
        %1502 = vmatprep.subr.bf16.mxu0 0
        %1503 = vmatpush1.bf16.msra.mxu0 %v1486
        %1504 = vmatprep.subr.bf16.mxu0 0
        %1505 = vmatpush2.bf16.msra.mxu0 0
        %1506 = vmatprep.subr.bf16.mxu0 0
        %1507 = vmatpush2.bf16.msra.mxu0 0
        %1508 = vmatprep.subr.bf16.mxu0 0
        %1509 = vmatpush2.bf16.msra.mxu0 0
        %1510 = vmatprep.subr.bf16.mxu0 0
        %1511 = vmatpush2.bf16.msra.mxu0 0
        %1512 = vmatprep.subr.bf16.mxu0 0
        %1513 = vmatpush2.bf16.msra.mxu0 0
        %1514 = vmatprep.subr.bf16.mxu0 0
        %1515 = vmatpush2.bf16.msra.mxu0 0
        %1516 = vmatprep.subr.bf16.mxu0 0
        %1517 = vmatpush2.bf16.msra.mxu0 0
        %1518 = vmatprep.subr.bf16.mxu0 0
        %1519 = vmatpush2.bf16.msra.mxu0 0
        %1520 = vmatprep.mubr.bf16.mxu0 0
        %1521 = vmatmul.mubr.bf16.gmra.mxu0 %v1462
        %v1522 = vpop.f32.mrf.mxu0
        %v1523 = vadd.f32 0.0, %v1522
        %v1524 = vpop.f32.mrf.mxu0
        %v1525 = vpop.f32.mrf.mxu0
        %v1526 = vadd.f32 0.0, %v1525
        %v1527 = vpop.f32.mrf.mxu0
        %1528 = vmatprep.mubr.bf16.mxu0 0
        %1529 = vmatmul.mubr.bf16.gmra.mxu0 %v1465
        %v1530 = vpop.f32.mrf.mxu0
        %v1531 = vadd.f32 0.0, %v1530
        %v1532 = vpop.f32.mrf.mxu0
        %v1533 = vpop.f32.mrf.mxu0
        %v1534 = vadd.f32 0.0, %v1533
        %v1535 = vpop.f32.mrf.mxu0
        %1536 = vmatprep.mubr.bf16.mxu0 0
        %1537 = vmatmul.mubr.bf16.gmra.mxu0 %v1468
        %v1538 = vpop.f32.mrf.mxu0
        %v1539 = vadd.f32 0.0, %v1538
        %v1540 = vpop.f32.mrf.mxu0
        %v1541 = vpop.f32.mrf.mxu0
        %v1542 = vadd.f32 0.0, %v1541
        %v1543 = vpop.f32.mrf.mxu0
        %1544 = vmatprep.mubr.bf16.mxu0 0
        %1545 = vmatmul.mubr.bf16.gmra.mxu0 %v1471
        %v1546 = vpop.f32.mrf.mxu0
        %v1547 = vadd.f32 0.0, %v1546
        %v1548 = vpop.f32.mrf.mxu0
        %v1549 = vpop.f32.mrf.mxu0
        %v1550 = vadd.f32 0.0, %v1549
        %v1551 = vpop.f32.mrf.mxu0
        %1552 = vmatprep.mubr.bf16.mxu0 0
        %1553 = vmatmul.mubr.bf16.gmra.mxu0 %v1474
        %v1554 = vpop.f32.mrf.mxu0
        %v1555 = vadd.f32 0.0, %v1554
        %v1556 = vpop.f32.mrf.mxu0
        %v1557 = vpop.f32.mrf.mxu0
        %v1558 = vadd.f32 0.0, %v1557
        %v1559 = vpop.f32.mrf.mxu0
        %1560 = vmatprep.mubr.bf16.mxu0 0
        %1561 = vmatmul.mubr.bf16.gmra.mxu0 %v1477
        %v1562 = vpop.f32.mrf.mxu0
        %v1563 = vadd.f32 0.0, %v1562
        %v1564 = vpop.f32.mrf.mxu0
        %v1565 = vpop.f32.mrf.mxu0
        %v1566 = vadd.f32 0.0, %v1565
        %v1567 = vpop.f32.mrf.mxu0
        %1568 = vmatprep.mubr.bf16.mxu0 0
        %1569 = vmatmul.mubr.bf16.gmra.mxu0 %v1480
        %v1570 = vpop.f32.mrf.mxu0
        %v1571 = vadd.f32 0.0, %v1570
        %v1572 = vpop.f32.mrf.mxu0
        %v1573 = vpop.f32.mrf.mxu0
        %v1574 = vadd.f32 0.0, %v1573
        %v1575 = vpop.f32.mrf.mxu0
        %1576 = vmatprep.mubr.bf16.mxu0 0
        %1577 = vmatmul.mubr.bf16.gmra.mxu0 %v1483
        %v1578 = vpop.f32.mrf.mxu0
        %v1579 = vadd.f32 0.0, %v1578
        %v1580 = vpop.f32.mrf.mxu0
        %v1581 = vpop.f32.mrf.mxu0
        %v1582 = vadd.f32 0.0, %v1581
        %v1583 = vpop.f32.mrf.mxu0
        %1584 = vdwg.mxu0
        %v1585 = vadd.f32 %v1203, %v1523
        %v1586 = vadd.f32 %v1204, %v1526
        %v1587 = vadd.f32 %v1205, %v1531
        %v1588 = vadd.f32 %v1206, %v1534
        %v1589 = vadd.f32 %v1207, %v1539
        %v1590 = vadd.f32 %v1208, %v1542
        %v1591 = vadd.f32 %v1209, %v1547
        %v1592 = vadd.f32 %v1210, %v1550
        %v1593 = vadd.f32 %v1211, %v1555
        %v1594 = vadd.f32 %v1212, %v1558
        %v1595 = vadd.f32 %v1213, %v1563
        %v1596 = vadd.f32 %v1214, %v1566
        %v1597 = vadd.f32 %v1215, %v1571
        %v1598 = vadd.f32 %v1216, %v1574
        %v1599 = vadd.f32 %v1217, %v1579
        %v1600 = vadd.f32 %v1218, %v1582
        %v1601 = vld [vmem:[%s1020] sm:$0xe]
        %v1602 = vld [vmem:[%s1020 + $0xc] sm:$0xe]
        %v1603 = vld [vmem:[%s1020 + $0x18] sm:$0xe]
        %v1604 = vld [vmem:[%s1020 + $0x24] sm:$0xe]
        %v1605 = vld [vmem:[%s1020 + $0x30] sm:$0xe]
        %v1606 = vld [vmem:[%s1020 + $0x3c] sm:$0xe]
        %v1607 = vld [vmem:[%s1020 + $0x48] sm:$0xe]
        %v1608 = vld [vmem:[%s1020 + $0x54] sm:$0xe]
        %v1633 = vrot.slane %v1601, 5
        %v1634 = vrot.slane %v1633, 4
        %v1635 = vrot.slane %v1220, 5
        %v1636 = vsel %vm794, %v1634, %v1635
        %v1637 = vrot.slane %v1635, 4
        %v1638 = vrot.slane %v1221, 5
        %v1639 = vsel %vm794, %v1637, %v1638
        %v1640 = vrot.slane %v1602, 5
        %v1641 = vrot.slane %v1640, 4
        %v1642 = vrot.slane %v1223, 5
        %v1643 = vsel %vm794, %v1641, %v1642
        %v1644 = vrot.slane %v1642, 4
        %v1645 = vrot.slane %v1224, 5
        %v1646 = vsel %vm794, %v1644, %v1645
        %v1647 = vrot.slane %v1603, 5
        %v1648 = vrot.slane %v1647, 4
        %v1649 = vrot.slane %v1226, 5
        %v1650 = vsel %vm794, %v1648, %v1649
        %v1651 = vrot.slane %v1649, 4
        %v1652 = vrot.slane %v1227, 5
        %v1653 = vsel %vm794, %v1651, %v1652
        %v1654 = vrot.slane %v1604, 5
        %v1655 = vrot.slane %v1654, 4
        %v1656 = vrot.slane %v1229, 5
        %v1657 = vsel %vm794, %v1655, %v1656
        %v1658 = vrot.slane %v1656, 4
        %v1659 = vrot.slane %v1230, 5
        %v1660 = vsel %vm794, %v1658, %v1659
        %v1661 = vrot.slane %v1605, 5
        %v1662 = vrot.slane %v1661, 4
        %v1663 = vrot.slane %v1232, 5
        %v1664 = vsel %vm794, %v1662, %v1663
        %v1665 = vrot.slane %v1663, 4
        %v1666 = vrot.slane %v1233, 5
        %v1667 = vsel %vm794, %v1665, %v1666
        %v1668 = vrot.slane %v1606, 5
        %v1669 = vrot.slane %v1668, 4
        %v1670 = vrot.slane %v1235, 5
        %v1671 = vsel %vm794, %v1669, %v1670
        %v1672 = vrot.slane %v1670, 4
        %v1673 = vrot.slane %v1236, 5
        %v1674 = vsel %vm794, %v1672, %v1673
        %v1675 = vrot.slane %v1607, 5
        %v1676 = vrot.slane %v1675, 4
        %v1677 = vrot.slane %v1238, 5
        %v1678 = vsel %vm794, %v1676, %v1677
        %v1679 = vrot.slane %v1677, 4
        %v1680 = vrot.slane %v1239, 5
        %v1681 = vsel %vm794, %v1679, %v1680
        %v1682 = vrot.slane %v1608, 5
        %v1683 = vrot.slane %v1682, 4
        %v1684 = vrot.slane %v1241, 5
        %v1685 = vsel %vm794, %v1683, %v1684
        %v1686 = vrot.slane %v1684, 4
        %v1687 = vrot.slane %v1242, 5
        %v1688 = vsel %vm794, %v1686, %v1687
        %s1689 = scalar_lea.vmem %s219, 10
        %v1690 = vld [vmem:[%s1689] sm:$0x3]
        %v1691 = vunpack.c.l.b16 %v1636
        %v1692 = vunpack.c.l.b16 %v1639
        %v1693 = vunpack.c.l.b16 %v1643
        %v1694 = vunpack.c.l.b16 %v1646
        %v1695 = vunpack.c.l.b16 %v1650
        %v1696 = vunpack.c.l.b16 %v1653
        %v1697 = vunpack.c.l.b16 %v1657
        %v1698 = vunpack.c.l.b16 %v1660
        %v1699 = vunpack.c.l.b16 %v1664
        %v1700 = vunpack.c.l.b16 %v1667
        %v1701 = vunpack.c.l.b16 %v1671
        %v1702 = vunpack.c.l.b16 %v1674
        %v1703 = vunpack.c.l.b16 %v1678
        %v1704 = vunpack.c.l.b16 %v1681
        %v1705 = vunpack.c.l.b16 %v1685
        %v1706 = vunpack.c.l.b16 %v1688
        %v1707 = vpack.c.b16 %v1692, %v1691
        %v1708 = vpack.c.b16 %v1694, %v1693
        %v1709 = vpack.c.b16 %v1696, %v1695
        %v1710 = vpack.c.b16 %v1698, %v1697
        %v1711 = vpack.c.b16 %v1700, %v1699
        %v1712 = vpack.c.b16 %v1702, %v1701
        %v1713 = vpack.c.b16 %v1704, %v1703
        %v1714 = vpack.c.b16 %v1706, %v1705
        %v1716 = vsel %vm475, %v1707, 0
        %v1719 = vsel %vm475, %v1708, 0
        %v1722 = vsel %vm475, %v1709, 0
        %v1725 = vsel %vm475, %v1710, 0
        %v1728 = vsel %vm475, %v1711, 0
        %v1731 = vsel %vm475, %v1712, 0
        %v1734 = vsel %vm475, %v1713, 0
        %v1737 = vsel %vm475, %v1714, 0
        %v1740 = vand.u32 %v1690, %v503
        %1742 = vmatprep.subr.bf16.mxu0 0
        %1743 = vmatpush1.bf16.msra.mxu0 0
        %1744 = vmatprep.subr.bf16.mxu0 0
        %1745 = vmatpush1.bf16.msra.mxu0 0
        %1746 = vmatprep.subr.bf16.mxu0 0
        %1747 = vmatpush1.bf16.msra.mxu0 0
        %1748 = vmatprep.subr.bf16.mxu0 0
        %1749 = vmatpush1.bf16.msra.mxu0 0
        %1750 = vmatprep.subr.bf16.mxu0 0
        %1751 = vmatpush1.bf16.msra.mxu0 0
        %1752 = vmatprep.subr.bf16.mxu0 0
        %1753 = vmatpush1.bf16.msra.mxu0 0
        %1754 = vmatprep.subr.bf16.mxu0 0
        %1755 = vmatpush1.bf16.msra.mxu0 0
        %1756 = vmatprep.subr.bf16.mxu0 0
        %1757 = vmatpush1.bf16.msra.mxu0 %v1740
        %1758 = vmatprep.subr.bf16.mxu0 0
        %1759 = vmatpush2.bf16.msra.mxu0 0
        %1760 = vmatprep.subr.bf16.mxu0 0
        %1761 = vmatpush2.bf16.msra.mxu0 0
        %1762 = vmatprep.subr.bf16.mxu0 0
        %1763 = vmatpush2.bf16.msra.mxu0 0
        %1764 = vmatprep.subr.bf16.mxu0 0
        %1765 = vmatpush2.bf16.msra.mxu0 0
        %1766 = vmatprep.subr.bf16.mxu0 0
        %1767 = vmatpush2.bf16.msra.mxu0 0
        %1768 = vmatprep.subr.bf16.mxu0 0
        %1769 = vmatpush2.bf16.msra.mxu0 0
        %1770 = vmatprep.subr.bf16.mxu0 0
        %1771 = vmatpush2.bf16.msra.mxu0 0
        %1772 = vmatprep.subr.bf16.mxu0 0
        %1773 = vmatpush2.bf16.msra.mxu0 0
        %1774 = vmatprep.mubr.bf16.mxu0 0
        %1775 = vmatmul.mubr.bf16.gmra.mxu0 %v1716
        %v1776 = vpop.f32.mrf.mxu0
        %v1777 = vadd.f32 0.0, %v1776
        %v1778 = vpop.f32.mrf.mxu0
        %v1779 = vpop.f32.mrf.mxu0
        %v1780 = vadd.f32 0.0, %v1779
        %v1781 = vpop.f32.mrf.mxu0
        %1782 = vmatprep.mubr.bf16.mxu0 0
        %1783 = vmatmul.mubr.bf16.gmra.mxu0 %v1719
        %v1784 = vpop.f32.mrf.mxu0
        %v1785 = vadd.f32 0.0, %v1784
        %v1786 = vpop.f32.mrf.mxu0
        %v1787 = vpop.f32.mrf.mxu0
        %v1788 = vadd.f32 0.0, %v1787
        %v1789 = vpop.f32.mrf.mxu0
        %1790 = vmatprep.mubr.bf16.mxu0 0
        %1791 = vmatmul.mubr.bf16.gmra.mxu0 %v1722
        %v1792 = vpop.f32.mrf.mxu0
        %v1793 = vadd.f32 0.0, %v1792
        %v1794 = vpop.f32.mrf.mxu0
        %v1795 = vpop.f32.mrf.mxu0
        %v1796 = vadd.f32 0.0, %v1795
        %v1797 = vpop.f32.mrf.mxu0
        %1798 = vmatprep.mubr.bf16.mxu0 0
        %1799 = vmatmul.mubr.bf16.gmra.mxu0 %v1725
        %v1800 = vpop.f32.mrf.mxu0
        %v1801 = vadd.f32 0.0, %v1800
        %v1802 = vpop.f32.mrf.mxu0
        %v1803 = vpop.f32.mrf.mxu0
        %v1804 = vadd.f32 0.0, %v1803
        %v1805 = vpop.f32.mrf.mxu0
        %1806 = vmatprep.mubr.bf16.mxu0 0
        %1807 = vmatmul.mubr.bf16.gmra.mxu0 %v1728
        %v1808 = vpop.f32.mrf.mxu0
        %v1809 = vadd.f32 0.0, %v1808
        %v1810 = vpop.f32.mrf.mxu0
        %v1811 = vpop.f32.mrf.mxu0
        %v1812 = vadd.f32 0.0, %v1811
        %v1813 = vpop.f32.mrf.mxu0
        %1814 = vmatprep.mubr.bf16.mxu0 0
        %1815 = vmatmul.mubr.bf16.gmra.mxu0 %v1731
        %v1816 = vpop.f32.mrf.mxu0
        %v1817 = vadd.f32 0.0, %v1816
        %v1818 = vpop.f32.mrf.mxu0
        %v1819 = vpop.f32.mrf.mxu0
        %v1820 = vadd.f32 0.0, %v1819
        %v1821 = vpop.f32.mrf.mxu0
        %1822 = vmatprep.mubr.bf16.mxu0 0
        %1823 = vmatmul.mubr.bf16.gmra.mxu0 %v1734
        %v1824 = vpop.f32.mrf.mxu0
        %v1825 = vadd.f32 0.0, %v1824
        %v1826 = vpop.f32.mrf.mxu0
        %v1827 = vpop.f32.mrf.mxu0
        %v1828 = vadd.f32 0.0, %v1827
        %v1829 = vpop.f32.mrf.mxu0
        %1830 = vmatprep.mubr.bf16.mxu0 0
        %1831 = vmatmul.mubr.bf16.gmra.mxu0 %v1737
        %v1832 = vpop.f32.mrf.mxu0
        %v1833 = vadd.f32 0.0, %v1832
        %v1834 = vpop.f32.mrf.mxu0
        %v1835 = vpop.f32.mrf.mxu0
        %v1836 = vadd.f32 0.0, %v1835
        %v1837 = vpop.f32.mrf.mxu0
        %1838 = vdwg.mxu0
        %v1839 = vadd.f32 %v1585, %v1777
        %v1840 = vadd.f32 %v1586, %v1780
        %v1841 = vadd.f32 %v1587, %v1785
        %v1842 = vadd.f32 %v1588, %v1788
        %v1843 = vadd.f32 %v1589, %v1793
        %v1844 = vadd.f32 %v1590, %v1796
        %v1845 = vadd.f32 %v1591, %v1801
        %v1846 = vadd.f32 %v1592, %v1804
        %v1847 = vadd.f32 %v1593, %v1809
        %v1848 = vadd.f32 %v1594, %v1812
        %v1849 = vadd.f32 %v1595, %v1817
        %v1850 = vadd.f32 %v1596, %v1820
        %v1851 = vadd.f32 %v1597, %v1825
        %v1852 = vadd.f32 %v1598, %v1828
        %v1853 = vadd.f32 %v1599, %v1833
        %v1854 = vadd.f32 %v1600, %v1836
        %s1855 = sadd.s32 %s225, 2
        %s1856 = smul.u32 %s1855, 3
        %s1857 = smul.addr %s1856, 4
        %s1858 = scalar_lea.vmem %s215, %s1857
        %v1859 = vld [vmem:[%s1858] sm:$0xf]
        %v1860 = vld [vmem:[%s1858 + $0x4] sm:$0xf]
        %v1861 = vld [vmem:[%s1858 + $0xc] sm:$0xf]
        %v1862 = vld [vmem:[%s1858 + $0x10] sm:$0xf]
        %v1863 = vld [vmem:[%s1858 + $0x18] sm:$0xf]
        %v1864 = vld [vmem:[%s1858 + $0x1c] sm:$0xf]
        %v1865 = vld [vmem:[%s1858 + $0x24] sm:$0xf]
        %v1866 = vld [vmem:[%s1858 + $0x28] sm:$0xf]
        %v1867 = vld [vmem:[%s1858 + $0x30] sm:$0xf]
        %v1868 = vld [vmem:[%s1858 + $0x34] sm:$0xf]
        %v1869 = vld [vmem:[%s1858 + $0x3c] sm:$0xf]
        %v1870 = vld [vmem:[%s1858 + $0x40] sm:$0xf]
        %v1871 = vld [vmem:[%s1858 + $0x48] sm:$0xf]
        %v1872 = vld [vmem:[%s1858 + $0x4c] sm:$0xf]
        %v1873 = vld [vmem:[%s1858 + $0x54] sm:$0xf]
        %v1874 = vld [vmem:[%s1858 + $0x58] sm:$0xf]
        %s1875 = scalar_lea.vmem %s219, 12
        %v1876 = vld [vmem:[%s1875] sm:$0x3]
        %v1893 = vunpack.c.l.b16 %v1859
        %v1894 = vunpack.c.l.b16 %v1860
        %v1895 = vunpack.c.l.b16 %v1861
        %v1896 = vunpack.c.l.b16 %v1862
        %v1897 = vunpack.c.l.b16 %v1863
        %v1898 = vunpack.c.l.b16 %v1864
        %v1899 = vunpack.c.l.b16 %v1865
        %v1900 = vunpack.c.l.b16 %v1866
        %v1901 = vunpack.c.l.b16 %v1867
        %v1902 = vunpack.c.l.b16 %v1868
        %v1903 = vunpack.c.l.b16 %v1869
        %v1904 = vunpack.c.l.b16 %v1870
        %v1905 = vunpack.c.l.b16 %v1871
        %v1906 = vunpack.c.l.b16 %v1872
        %v1907 = vunpack.c.l.b16 %v1873
        %v1908 = vunpack.c.l.b16 %v1874
        %v1909 = vpack.c.b16 %v1894, %v1893
        %v1910 = vpack.c.b16 %v1896, %v1895
        %v1911 = vpack.c.b16 %v1898, %v1897
        %v1912 = vpack.c.b16 %v1900, %v1899
        %v1913 = vpack.c.b16 %v1902, %v1901
        %v1914 = vpack.c.b16 %v1904, %v1903
        %v1915 = vpack.c.b16 %v1906, %v1905
        %v1916 = vpack.c.b16 %v1908, %v1907
        %v1918 = vsel %vm475, %v1909, 0
        %v1921 = vsel %vm475, %v1910, 0
        %v1924 = vsel %vm475, %v1911, 0
        %v1927 = vsel %vm475, %v1912, 0
        %v1930 = vsel %vm475, %v1913, 0
        %v1933 = vsel %vm475, %v1914, 0
        %v1936 = vsel %vm475, %v1915, 0
        %v1939 = vsel %vm475, %v1916, 0
        %v1942 = vand.u32 %v1876, %v503
        %1944 = vmatprep.subr.bf16.mxu0 0
        %1945 = vmatpush1.bf16.msra.mxu0 0
        %1946 = vmatprep.subr.bf16.mxu0 0
        %1947 = vmatpush1.bf16.msra.mxu0 0
        %1948 = vmatprep.subr.bf16.mxu0 0
        %1949 = vmatpush1.bf16.msra.mxu0 0
        %1950 = vmatprep.subr.bf16.mxu0 0
        %1951 = vmatpush1.bf16.msra.mxu0 0
        %1952 = vmatprep.subr.bf16.mxu0 0
        %1953 = vmatpush1.bf16.msra.mxu0 0
        %1954 = vmatprep.subr.bf16.mxu0 0
        %1955 = vmatpush1.bf16.msra.mxu0 0
        %1956 = vmatprep.subr.bf16.mxu0 0
        %1957 = vmatpush1.bf16.msra.mxu0 0
        %1958 = vmatprep.subr.bf16.mxu0 0
        %1959 = vmatpush1.bf16.msra.mxu0 %v1942
        %1960 = vmatprep.subr.bf16.mxu0 0
        %1961 = vmatpush2.bf16.msra.mxu0 0
        %1962 = vmatprep.subr.bf16.mxu0 0
        %1963 = vmatpush2.bf16.msra.mxu0 0
        %1964 = vmatprep.subr.bf16.mxu0 0
        %1965 = vmatpush2.bf16.msra.mxu0 0
        %1966 = vmatprep.subr.bf16.mxu0 0
        %1967 = vmatpush2.bf16.msra.mxu0 0
        %1968 = vmatprep.subr.bf16.mxu0 0
        %1969 = vmatpush2.bf16.msra.mxu0 0
        %1970 = vmatprep.subr.bf16.mxu0 0
        %1971 = vmatpush2.bf16.msra.mxu0 0
        %1972 = vmatprep.subr.bf16.mxu0 0
        %1973 = vmatpush2.bf16.msra.mxu0 0
        %1974 = vmatprep.subr.bf16.mxu0 0
        %1975 = vmatpush2.bf16.msra.mxu0 0
        %1976 = vmatprep.mubr.bf16.mxu0 0
        %1977 = vmatmul.mubr.bf16.gmra.mxu0 %v1918
        %v1978 = vpop.f32.mrf.mxu0
        %v1979 = vadd.f32 0.0, %v1978
        %v1980 = vpop.f32.mrf.mxu0
        %v1981 = vpop.f32.mrf.mxu0
        %v1982 = vadd.f32 0.0, %v1981
        %v1983 = vpop.f32.mrf.mxu0
        %1984 = vmatprep.mubr.bf16.mxu0 0
        %1985 = vmatmul.mubr.bf16.gmra.mxu0 %v1921
        %v1986 = vpop.f32.mrf.mxu0
        %v1987 = vadd.f32 0.0, %v1986
        %v1988 = vpop.f32.mrf.mxu0
        %v1989 = vpop.f32.mrf.mxu0
        %v1990 = vadd.f32 0.0, %v1989
        %v1991 = vpop.f32.mrf.mxu0
        %1992 = vmatprep.mubr.bf16.mxu0 0
        %1993 = vmatmul.mubr.bf16.gmra.mxu0 %v1924
        %v1994 = vpop.f32.mrf.mxu0
        %v1995 = vadd.f32 0.0, %v1994
        %v1996 = vpop.f32.mrf.mxu0
        %v1997 = vpop.f32.mrf.mxu0
        %v1998 = vadd.f32 0.0, %v1997
        %v1999 = vpop.f32.mrf.mxu0
        %2000 = vmatprep.mubr.bf16.mxu0 0
        %2001 = vmatmul.mubr.bf16.gmra.mxu0 %v1927
        %v2002 = vpop.f32.mrf.mxu0
        %v2003 = vadd.f32 0.0, %v2002
        %v2004 = vpop.f32.mrf.mxu0
        %v2005 = vpop.f32.mrf.mxu0
        %v2006 = vadd.f32 0.0, %v2005
        %v2007 = vpop.f32.mrf.mxu0
        %2008 = vmatprep.mubr.bf16.mxu0 0
        %2009 = vmatmul.mubr.bf16.gmra.mxu0 %v1930
        %v2010 = vpop.f32.mrf.mxu0
        %v2011 = vadd.f32 0.0, %v2010
        %v2012 = vpop.f32.mrf.mxu0
        %v2013 = vpop.f32.mrf.mxu0
        %v2014 = vadd.f32 0.0, %v2013
        %v2015 = vpop.f32.mrf.mxu0
        %2016 = vmatprep.mubr.bf16.mxu0 0
        %2017 = vmatmul.mubr.bf16.gmra.mxu0 %v1933
        %v2018 = vpop.f32.mrf.mxu0
        %v2019 = vadd.f32 0.0, %v2018
        %v2020 = vpop.f32.mrf.mxu0
        %v2021 = vpop.f32.mrf.mxu0
        %v2022 = vadd.f32 0.0, %v2021
        %v2023 = vpop.f32.mrf.mxu0
        %2024 = vmatprep.mubr.bf16.mxu0 0
        %2025 = vmatmul.mubr.bf16.gmra.mxu0 %v1936
        %v2026 = vpop.f32.mrf.mxu0
        %v2027 = vadd.f32 0.0, %v2026
        %v2028 = vpop.f32.mrf.mxu0
        %v2029 = vpop.f32.mrf.mxu0
        %v2030 = vadd.f32 0.0, %v2029
        %v2031 = vpop.f32.mrf.mxu0
        %2032 = vmatprep.mubr.bf16.mxu0 0
        %2033 = vmatmul.mubr.bf16.gmra.mxu0 %v1939
        %v2034 = vpop.f32.mrf.mxu0
        %v2035 = vadd.f32 0.0, %v2034
        %v2036 = vpop.f32.mrf.mxu0
        %v2037 = vpop.f32.mrf.mxu0
        %v2038 = vadd.f32 0.0, %v2037
        %v2039 = vpop.f32.mrf.mxu0
        %2040 = vdwg.mxu0
        %v2041 = vadd.f32 %v1839, %v1979
        %v2042 = vadd.f32 %v1840, %v1982
        %v2043 = vadd.f32 %v1841, %v1987
        %v2044 = vadd.f32 %v1842, %v1990
        %v2045 = vadd.f32 %v1843, %v1995
        %v2046 = vadd.f32 %v1844, %v1998
        %v2047 = vadd.f32 %v1845, %v2003
        %v2048 = vadd.f32 %v1846, %v2006
        %v2049 = vadd.f32 %v1847, %v2011
        %v2050 = vadd.f32 %v1848, %v2014
        %v2051 = vadd.f32 %v1849, %v2019
        %v2052 = vadd.f32 %v1850, %v2022
        %v2053 = vadd.f32 %v1851, %v2027
        %v2054 = vadd.f32 %v1852, %v2030
        %v2055 = vadd.f32 %v1853, %v2035
        %v2056 = vadd.f32 %v1854, %v2038
        %v2057 = vld [vmem:[%s1858] sm:$0xf]
        %v2058 = vld [vmem:[%s1858 + $0x4] sm:$0xf]
        %v2059 = vld [vmem:[%s1858 + $0x8] sm:$0x1]
        %v2060 = vld [vmem:[%s1858 + $0xc] sm:$0xf]
        %v2061 = vld [vmem:[%s1858 + $0x10] sm:$0xf]
        %v2062 = vld [vmem:[%s1858 + $0x14] sm:$0x1]
        %v2063 = vld [vmem:[%s1858 + $0x18] sm:$0xf]
        %v2064 = vld [vmem:[%s1858 + $0x1c] sm:$0xf]
        %v2065 = vld [vmem:[%s1858 + $0x20] sm:$0x1]
        %v2066 = vld [vmem:[%s1858 + $0x24] sm:$0xf]
        %v2067 = vld [vmem:[%s1858 + $0x28] sm:$0xf]
        %v2068 = vld [vmem:[%s1858 + $0x2c] sm:$0x1]
        %v2069 = vld [vmem:[%s1858 + $0x30] sm:$0xf]
        %v2070 = vld [vmem:[%s1858 + $0x34] sm:$0xf]
        %v2071 = vld [vmem:[%s1858 + $0x38] sm:$0x1]
        %v2072 = vld [vmem:[%s1858 + $0x3c] sm:$0xf]
        %v2073 = vld [vmem:[%s1858 + $0x40] sm:$0xf]
        %v2074 = vld [vmem:[%s1858 + $0x44] sm:$0x1]
        %v2075 = vld [vmem:[%s1858 + $0x48] sm:$0xf]
        %v2076 = vld [vmem:[%s1858 + $0x4c] sm:$0xf]
        %v2077 = vld [vmem:[%s1858 + $0x50] sm:$0x1]
        %v2078 = vld [vmem:[%s1858 + $0x54] sm:$0xf]
        %v2079 = vld [vmem:[%s1858 + $0x58] sm:$0xf]
        %v2080 = vld [vmem:[%s1858 + $0x5c] sm:$0x1]
        %v2082 = vshrl.u32 %v2057, 16
        %v2084 = vrot.slane %v2082, 4
        %v2085 = vshll.u32 %v2057, 16
        %v2087 = vrot.slane %v2085, 5
        %v2088 = vor.u32 %v2084, %v2087
        %v2089 = vrot.slane %v2088, 4
        %v2091 = vshll.u32 %v2058, 16
        %v2093 = vrot.slane %v2091, 5
        %v2094 = vsel %vm256, %v2089, %v2093
        %v2095 = vshrl.u32 %v2058, 16
        %v2097 = vrot.slane %v2095, 4
        %v2098 = vor.u32 %v2097, %v2093
        %v2099 = vrot.slane %v2098, 4
        %v2101 = vshll.u32 %v2059, 16
        %v2103 = vrot.slane %v2101, 5
        %v2104 = vsel %vm256, %v2099, %v2103
        %v2106 = vshrl.u32 %v2060, 16
        %v2108 = vrot.slane %v2106, 4
        %v2109 = vshll.u32 %v2060, 16
        %v2111 = vrot.slane %v2109, 5
        %v2112 = vor.u32 %v2108, %v2111
        %v2113 = vrot.slane %v2112, 4
        %v2115 = vshll.u32 %v2061, 16
        %v2117 = vrot.slane %v2115, 5
        %v2118 = vsel %vm256, %v2113, %v2117
        %v2119 = vshrl.u32 %v2061, 16
        %v2121 = vrot.slane %v2119, 4
        %v2122 = vor.u32 %v2121, %v2117
        %v2123 = vrot.slane %v2122, 4
        %v2125 = vshll.u32 %v2062, 16
        %v2127 = vrot.slane %v2125, 5
        %v2128 = vsel %vm256, %v2123, %v2127
        %v2130 = vshrl.u32 %v2063, 16
        %v2132 = vrot.slane %v2130, 4
        %v2133 = vshll.u32 %v2063, 16
        %v2135 = vrot.slane %v2133, 5
        %v2136 = vor.u32 %v2132, %v2135
        %v2137 = vrot.slane %v2136, 4
        %v2139 = vshll.u32 %v2064, 16
        %v2141 = vrot.slane %v2139, 5
        %v2142 = vsel %vm256, %v2137, %v2141
        %v2143 = vshrl.u32 %v2064, 16
        %v2145 = vrot.slane %v2143, 4
        %v2146 = vor.u32 %v2145, %v2141
        %v2147 = vrot.slane %v2146, 4
        %v2149 = vshll.u32 %v2065, 16
        %v2151 = vrot.slane %v2149, 5
        %v2152 = vsel %vm256, %v2147, %v2151
        %v2154 = vshrl.u32 %v2066, 16
        %v2156 = vrot.slane %v2154, 4
        %v2157 = vshll.u32 %v2066, 16
        %v2159 = vrot.slane %v2157, 5
        %v2160 = vor.u32 %v2156, %v2159
        %v2161 = vrot.slane %v2160, 4
        %v2163 = vshll.u32 %v2067, 16
        %v2165 = vrot.slane %v2163, 5
        %v2166 = vsel %vm256, %v2161, %v2165
        %v2167 = vshrl.u32 %v2067, 16
        %v2169 = vrot.slane %v2167, 4
        %v2170 = vor.u32 %v2169, %v2165
        %v2171 = vrot.slane %v2170, 4
        %v2173 = vshll.u32 %v2068, 16
        %v2175 = vrot.slane %v2173, 5
        %v2176 = vsel %vm256, %v2171, %v2175
        %v2178 = vshrl.u32 %v2069, 16
        %v2180 = vrot.slane %v2178, 4
        %v2181 = vshll.u32 %v2069, 16
        %v2183 = vrot.slane %v2181, 5
        %v2184 = vor.u32 %v2180, %v2183
        %v2185 = vrot.slane %v2184, 4
        %v2187 = vshll.u32 %v2070, 16
        %v2189 = vrot.slane %v2187, 5
        %v2190 = vsel %vm256, %v2185, %v2189
        %v2191 = vshrl.u32 %v2070, 16
        %v2193 = vrot.slane %v2191, 4
        %v2194 = vor.u32 %v2193, %v2189
        %v2195 = vrot.slane %v2194, 4
        %v2197 = vshll.u32 %v2071, 16
        %v2199 = vrot.slane %v2197, 5
        %v2200 = vsel %vm256, %v2195, %v2199
        %v2202 = vshrl.u32 %v2072, 16
        %v2204 = vrot.slane %v2202, 4
        %v2205 = vshll.u32 %v2072, 16
        %v2207 = vrot.slane %v2205, 5
        %v2208 = vor.u32 %v2204, %v2207
        %v2209 = vrot.slane %v2208, 4
        %v2211 = vshll.u32 %v2073, 16
        %v2213 = vrot.slane %v2211, 5
        %v2214 = vsel %vm256, %v2209, %v2213
        %v2215 = vshrl.u32 %v2073, 16
        %v2217 = vrot.slane %v2215, 4
        %v2218 = vor.u32 %v2217, %v2213
        %v2219 = vrot.slane %v2218, 4
        %v2221 = vshll.u32 %v2074, 16
        %v2223 = vrot.slane %v2221, 5
        %v2224 = vsel %vm256, %v2219, %v2223
        %v2226 = vshrl.u32 %v2075, 16
        %v2228 = vrot.slane %v2226, 4
        %v2229 = vshll.u32 %v2075, 16
        %v2231 = vrot.slane %v2229, 5
        %v2232 = vor.u32 %v2228, %v2231
        %v2233 = vrot.slane %v2232, 4
        %v2235 = vshll.u32 %v2076, 16
        %v2237 = vrot.slane %v2235, 5
        %v2238 = vsel %vm256, %v2233, %v2237
        %v2239 = vshrl.u32 %v2076, 16
        %v2241 = vrot.slane %v2239, 4
        %v2242 = vor.u32 %v2241, %v2237
        %v2243 = vrot.slane %v2242, 4
        %v2245 = vshll.u32 %v2077, 16
        %v2247 = vrot.slane %v2245, 5
        %v2248 = vsel %vm256, %v2243, %v2247
        %v2250 = vshrl.u32 %v2078, 16
        %v2252 = vrot.slane %v2250, 4
        %v2253 = vshll.u32 %v2078, 16
        %v2255 = vrot.slane %v2253, 5
        %v2256 = vor.u32 %v2252, %v2255
        %v2257 = vrot.slane %v2256, 4
        %v2259 = vshll.u32 %v2079, 16
        %v2261 = vrot.slane %v2259, 5
        %v2262 = vsel %vm256, %v2257, %v2261
        %v2263 = vshrl.u32 %v2079, 16
        %v2265 = vrot.slane %v2263, 4
        %v2266 = vor.u32 %v2265, %v2261
        %v2267 = vrot.slane %v2266, 4
        %v2269 = vshll.u32 %v2080, 16
        %v2271 = vrot.slane %v2269, 5
        %v2272 = vsel %vm256, %v2267, %v2271
        %s2273 = scalar_lea.vmem %s219, 14
        %v2274 = vld [vmem:[%s2273] sm:$0x3]
        %v2275 = vunpack.c.l.b16 %v2094
        %v2276 = vunpack.c.l.b16 %v2104
        %v2277 = vunpack.c.l.b16 %v2118
        %v2278 = vunpack.c.l.b16 %v2128
        %v2279 = vunpack.c.l.b16 %v2142
        %v2280 = vunpack.c.l.b16 %v2152
        %v2281 = vunpack.c.l.b16 %v2166
        %v2282 = vunpack.c.l.b16 %v2176
        %v2283 = vunpack.c.l.b16 %v2190
        %v2284 = vunpack.c.l.b16 %v2200
        %v2285 = vunpack.c.l.b16 %v2214
        %v2286 = vunpack.c.l.b16 %v2224
        %v2287 = vunpack.c.l.b16 %v2238
        %v2288 = vunpack.c.l.b16 %v2248
        %v2289 = vunpack.c.l.b16 %v2262
        %v2290 = vunpack.c.l.b16 %v2272
        %v2291 = vpack.c.b16 %v2276, %v2275
        %v2292 = vpack.c.b16 %v2278, %v2277
        %v2293 = vpack.c.b16 %v2280, %v2279
        %v2294 = vpack.c.b16 %v2282, %v2281
        %v2295 = vpack.c.b16 %v2284, %v2283
        %v2296 = vpack.c.b16 %v2286, %v2285
        %v2297 = vpack.c.b16 %v2288, %v2287
        %v2298 = vpack.c.b16 %v2290, %v2289
        %v2300 = vsel %vm475, %v2291, 0
        %v2303 = vsel %vm475, %v2292, 0
        %v2306 = vsel %vm475, %v2293, 0
        %v2309 = vsel %vm475, %v2294, 0
        %v2312 = vsel %vm475, %v2295, 0
        %v2315 = vsel %vm475, %v2296, 0
        %v2318 = vsel %vm475, %v2297, 0
        %v2321 = vsel %vm475, %v2298, 0
        %v2324 = vand.u32 %v2274, %v503
        %2326 = vmatprep.subr.bf16.mxu0 0
        %2327 = vmatpush1.bf16.msra.mxu0 0
        %2328 = vmatprep.subr.bf16.mxu0 0
        %2329 = vmatpush1.bf16.msra.mxu0 0
        %2330 = vmatprep.subr.bf16.mxu0 0
        %2331 = vmatpush1.bf16.msra.mxu0 0
        %2332 = vmatprep.subr.bf16.mxu0 0
        %2333 = vmatpush1.bf16.msra.mxu0 0
        %2334 = vmatprep.subr.bf16.mxu0 0
        %2335 = vmatpush1.bf16.msra.mxu0 0
        %2336 = vmatprep.subr.bf16.mxu0 0
        %2337 = vmatpush1.bf16.msra.mxu0 0
        %2338 = vmatprep.subr.bf16.mxu0 0
        %2339 = vmatpush1.bf16.msra.mxu0 0
        %2340 = vmatprep.subr.bf16.mxu0 0
        %2341 = vmatpush1.bf16.msra.mxu0 %v2324
        %2342 = vmatprep.subr.bf16.mxu0 0
        %2343 = vmatpush2.bf16.msra.mxu0 0
        %2344 = vmatprep.subr.bf16.mxu0 0
        %2345 = vmatpush2.bf16.msra.mxu0 0
        %2346 = vmatprep.subr.bf16.mxu0 0
        %2347 = vmatpush2.bf16.msra.mxu0 0
        %2348 = vmatprep.subr.bf16.mxu0 0
        %2349 = vmatpush2.bf16.msra.mxu0 0
        %2350 = vmatprep.subr.bf16.mxu0 0
        %2351 = vmatpush2.bf16.msra.mxu0 0
        %2352 = vmatprep.subr.bf16.mxu0 0
        %2353 = vmatpush2.bf16.msra.mxu0 0
        %2354 = vmatprep.subr.bf16.mxu0 0
        %2355 = vmatpush2.bf16.msra.mxu0 0
        %2356 = vmatprep.subr.bf16.mxu0 0
        %2357 = vmatpush2.bf16.msra.mxu0 0
        %2358 = vmatprep.mubr.bf16.mxu0 0
        %2359 = vmatmul.mubr.bf16.gmra.mxu0 %v2300
        %v2360 = vpop.f32.mrf.mxu0
        %v2361 = vadd.f32 0.0, %v2360
        %v2362 = vpop.f32.mrf.mxu0
        %v2363 = vpop.f32.mrf.mxu0
        %v2364 = vadd.f32 0.0, %v2363
        %v2365 = vpop.f32.mrf.mxu0
        %2366 = vmatprep.mubr.bf16.mxu0 0
        %2367 = vmatmul.mubr.bf16.gmra.mxu0 %v2303
        %v2368 = vpop.f32.mrf.mxu0
        %v2369 = vadd.f32 0.0, %v2368
        %v2370 = vpop.f32.mrf.mxu0
        %v2371 = vpop.f32.mrf.mxu0
        %v2372 = vadd.f32 0.0, %v2371
        %v2373 = vpop.f32.mrf.mxu0
        %2374 = vmatprep.mubr.bf16.mxu0 0
        %2375 = vmatmul.mubr.bf16.gmra.mxu0 %v2306
        %v2376 = vpop.f32.mrf.mxu0
        %v2377 = vadd.f32 0.0, %v2376
        %v2378 = vpop.f32.mrf.mxu0
        %v2379 = vpop.f32.mrf.mxu0
        %v2380 = vadd.f32 0.0, %v2379
        %v2381 = vpop.f32.mrf.mxu0
        %2382 = vmatprep.mubr.bf16.mxu0 0
        %2383 = vmatmul.mubr.bf16.gmra.mxu0 %v2309
        %v2384 = vpop.f32.mrf.mxu0
        %v2385 = vadd.f32 0.0, %v2384
        %v2386 = vpop.f32.mrf.mxu0
        %v2387 = vpop.f32.mrf.mxu0
        %v2388 = vadd.f32 0.0, %v2387
        %v2389 = vpop.f32.mrf.mxu0
        %2390 = vmatprep.mubr.bf16.mxu0 0
        %2391 = vmatmul.mubr.bf16.gmra.mxu0 %v2312
        %v2392 = vpop.f32.mrf.mxu0
        %v2393 = vadd.f32 0.0, %v2392
        %v2394 = vpop.f32.mrf.mxu0
        %v2395 = vpop.f32.mrf.mxu0
        %v2396 = vadd.f32 0.0, %v2395
        %v2397 = vpop.f32.mrf.mxu0
        %2398 = vmatprep.mubr.bf16.mxu0 0
        %2399 = vmatmul.mubr.bf16.gmra.mxu0 %v2315
        %v2400 = vpop.f32.mrf.mxu0
        %v2401 = vadd.f32 0.0, %v2400
        %v2402 = vpop.f32.mrf.mxu0
        %v2403 = vpop.f32.mrf.mxu0
        %v2404 = vadd.f32 0.0, %v2403
        %v2405 = vpop.f32.mrf.mxu0
        %2406 = vmatprep.mubr.bf16.mxu0 0
        %2407 = vmatmul.mubr.bf16.gmra.mxu0 %v2318
        %v2408 = vpop.f32.mrf.mxu0
        %v2409 = vadd.f32 0.0, %v2408
        %v2410 = vpop.f32.mrf.mxu0
        %v2411 = vpop.f32.mrf.mxu0
        %v2412 = vadd.f32 0.0, %v2411
        %v2413 = vpop.f32.mrf.mxu0
        %2414 = vmatprep.mubr.bf16.mxu0 0
        %2415 = vmatmul.mubr.bf16.gmra.mxu0 %v2321
        %v2416 = vpop.f32.mrf.mxu0
        %v2417 = vadd.f32 0.0, %v2416
        %v2418 = vpop.f32.mrf.mxu0
        %v2419 = vpop.f32.mrf.mxu0
        %v2420 = vadd.f32 0.0, %v2419
        %v2421 = vpop.f32.mrf.mxu0
        %2422 = vdwg.mxu0
        %v2423 = vadd.f32 %v2041, %v2361
        %v2424 = vadd.f32 %v2042, %v2364
        %v2425 = vadd.f32 %v2043, %v2369
        %v2426 = vadd.f32 %v2044, %v2372
        %v2427 = vadd.f32 %v2045, %v2377
        %v2428 = vadd.f32 %v2046, %v2380
        %v2429 = vadd.f32 %v2047, %v2385
        %v2430 = vadd.f32 %v2048, %v2388
        %v2431 = vadd.f32 %v2049, %v2393
        %v2432 = vadd.f32 %v2050, %v2396
        %v2433 = vadd.f32 %v2051, %v2401
        %v2434 = vadd.f32 %v2052, %v2404
        %v2435 = vadd.f32 %v2053, %v2409
        %v2436 = vadd.f32 %v2054, %v2412
        %v2437 = vadd.f32 %v2055, %v2417
        %v2438 = vadd.f32 %v2056, %v2420
        %v2439 = vld [vmem:[%s1858] sm:$0xe]
        %v2440 = vld [vmem:[%s1858 + $0xc] sm:$0xe]
        %v2441 = vld [vmem:[%s1858 + $0x18] sm:$0xe]
        %v2442 = vld [vmem:[%s1858 + $0x24] sm:$0xe]
        %v2443 = vld [vmem:[%s1858 + $0x30] sm:$0xe]
        %v2444 = vld [vmem:[%s1858 + $0x3c] sm:$0xe]
        %v2445 = vld [vmem:[%s1858 + $0x48] sm:$0xe]
        %v2446 = vld [vmem:[%s1858 + $0x54] sm:$0xe]
        %v2471 = vrot.slane %v2439, 5
        %v2472 = vrot.slane %v2471, 4
        %v2473 = vrot.slane %v2058, 5
        %v2474 = vsel %vm794, %v2472, %v2473
        %v2475 = vrot.slane %v2473, 4
        %v2476 = vrot.slane %v2059, 5
        %v2477 = vsel %vm794, %v2475, %v2476
        %v2478 = vrot.slane %v2440, 5
        %v2479 = vrot.slane %v2478, 4
        %v2480 = vrot.slane %v2061, 5
        %v2481 = vsel %vm794, %v2479, %v2480
        %v2482 = vrot.slane %v2480, 4
        %v2483 = vrot.slane %v2062, 5
        %v2484 = vsel %vm794, %v2482, %v2483
        %v2485 = vrot.slane %v2441, 5
        %v2486 = vrot.slane %v2485, 4
        %v2487 = vrot.slane %v2064, 5
        %v2488 = vsel %vm794, %v2486, %v2487
        %v2489 = vrot.slane %v2487, 4
        %v2490 = vrot.slane %v2065, 5
        %v2491 = vsel %vm794, %v2489, %v2490
        %v2492 = vrot.slane %v2442, 5
        %v2493 = vrot.slane %v2492, 4
        %v2494 = vrot.slane %v2067, 5
        %v2495 = vsel %vm794, %v2493, %v2494
        %v2496 = vrot.slane %v2494, 4
        %v2497 = vrot.slane %v2068, 5
        %v2498 = vsel %vm794, %v2496, %v2497
        %v2499 = vrot.slane %v2443, 5
        %v2500 = vrot.slane %v2499, 4
        %v2501 = vrot.slane %v2070, 5
        %v2502 = vsel %vm794, %v2500, %v2501
        %v2503 = vrot.slane %v2501, 4
        %v2504 = vrot.slane %v2071, 5
        %v2505 = vsel %vm794, %v2503, %v2504
        %v2506 = vrot.slane %v2444, 5
        %v2507 = vrot.slane %v2506, 4
        %v2508 = vrot.slane %v2073, 5
        %v2509 = vsel %vm794, %v2507, %v2508
        %v2510 = vrot.slane %v2508, 4
        %v2511 = vrot.slane %v2074, 5
        %v2512 = vsel %vm794, %v2510, %v2511
        %v2513 = vrot.slane %v2445, 5
        %v2514 = vrot.slane %v2513, 4
        %v2515 = vrot.slane %v2076, 5
        %v2516 = vsel %vm794, %v2514, %v2515
        %v2517 = vrot.slane %v2515, 4
        %v2518 = vrot.slane %v2077, 5
        %v2519 = vsel %vm794, %v2517, %v2518
        %v2520 = vrot.slane %v2446, 5
        %v2521 = vrot.slane %v2520, 4
        %v2522 = vrot.slane %v2079, 5
        %v2523 = vsel %vm794, %v2521, %v2522
        %v2524 = vrot.slane %v2522, 4
        %v2525 = vrot.slane %v2080, 5
        %v2526 = vsel %vm794, %v2524, %v2525
        %s2527 = scalar_lea.vmem %s219, 16
        %v2528 = vld [vmem:[%s2527] sm:$0x3]
        %v2529 = vunpack.c.l.b16 %v2474
        %v2530 = vunpack.c.l.b16 %v2477
        %v2531 = vunpack.c.l.b16 %v2481
        %v2532 = vunpack.c.l.b16 %v2484
        %v2533 = vunpack.c.l.b16 %v2488
        %v2534 = vunpack.c.l.b16 %v2491
        %v2535 = vunpack.c.l.b16 %v2495
        %v2536 = vunpack.c.l.b16 %v2498
        %v2537 = vunpack.c.l.b16 %v2502
        %v2538 = vunpack.c.l.b16 %v2505
        %v2539 = vunpack.c.l.b16 %v2509
        %v2540 = vunpack.c.l.b16 %v2512
        %v2541 = vunpack.c.l.b16 %v2516
        %v2542 = vunpack.c.l.b16 %v2519
        %v2543 = vunpack.c.l.b16 %v2523
        %v2544 = vunpack.c.l.b16 %v2526
        %v2545 = vpack.c.b16 %v2530, %v2529
        %v2546 = vpack.c.b16 %v2532, %v2531
        %v2547 = vpack.c.b16 %v2534, %v2533
        %v2548 = vpack.c.b16 %v2536, %v2535
        %v2549 = vpack.c.b16 %v2538, %v2537
        %v2550 = vpack.c.b16 %v2540, %v2539
        %v2551 = vpack.c.b16 %v2542, %v2541
        %v2552 = vpack.c.b16 %v2544, %v2543
        %v2554 = vsel %vm475, %v2545, 0
        %v2557 = vsel %vm475, %v2546, 0
        %v2560 = vsel %vm475, %v2547, 0
        %v2563 = vsel %vm475, %v2548, 0
        %v2566 = vsel %vm475, %v2549, 0
        %v2569 = vsel %vm475, %v2550, 0
        %v2572 = vsel %vm475, %v2551, 0
        %v2575 = vsel %vm475, %v2552, 0
        %v2578 = vand.u32 %v2528, %v503
        %2580 = vmatprep.subr.bf16.mxu0 0
        %2581 = vmatpush1.bf16.msra.mxu0 0
        %2582 = vmatprep.subr.bf16.mxu0 0
        %2583 = vmatpush1.bf16.msra.mxu0 0
        %2584 = vmatprep.subr.bf16.mxu0 0
        %2585 = vmatpush1.bf16.msra.mxu0 0
        %2586 = vmatprep.subr.bf16.mxu0 0
        %2587 = vmatpush1.bf16.msra.mxu0 0
        %2588 = vmatprep.subr.bf16.mxu0 0
        %2589 = vmatpush1.bf16.msra.mxu0 0
        %2590 = vmatprep.subr.bf16.mxu0 0
        %2591 = vmatpush1.bf16.msra.mxu0 0
        %2592 = vmatprep.subr.bf16.mxu0 0
        %2593 = vmatpush1.bf16.msra.mxu0 0
        %2594 = vmatprep.subr.bf16.mxu0 0
        %2595 = vmatpush1.bf16.msra.mxu0 %v2578
        %2596 = vmatprep.subr.bf16.mxu0 0
        %2597 = vmatpush2.bf16.msra.mxu0 0
        %2598 = vmatprep.subr.bf16.mxu0 0
        %2599 = vmatpush2.bf16.msra.mxu0 0
        %2600 = vmatprep.subr.bf16.mxu0 0
        %2601 = vmatpush2.bf16.msra.mxu0 0
        %2602 = vmatprep.subr.bf16.mxu0 0
        %2603 = vmatpush2.bf16.msra.mxu0 0
        %2604 = vmatprep.subr.bf16.mxu0 0
        %2605 = vmatpush2.bf16.msra.mxu0 0
        %2606 = vmatprep.subr.bf16.mxu0 0
        %2607 = vmatpush2.bf16.msra.mxu0 0
        %2608 = vmatprep.subr.bf16.mxu0 0
        %2609 = vmatpush2.bf16.msra.mxu0 0
        %2610 = vmatprep.subr.bf16.mxu0 0
        %2611 = vmatpush2.bf16.msra.mxu0 0
        %2612 = vmatprep.mubr.bf16.mxu0 0
        %2613 = vmatmul.mubr.bf16.gmra.mxu0 %v2554
        %v2614 = vpop.f32.mrf.mxu0
        %v2615 = vadd.f32 0.0, %v2614
        %v2616 = vpop.f32.mrf.mxu0
        %v2617 = vpop.f32.mrf.mxu0
        %v2618 = vadd.f32 0.0, %v2617
        %v2619 = vpop.f32.mrf.mxu0
        %2620 = vmatprep.mubr.bf16.mxu0 0
        %2621 = vmatmul.mubr.bf16.gmra.mxu0 %v2557
        %v2622 = vpop.f32.mrf.mxu0
        %v2623 = vadd.f32 0.0, %v2622
        %v2624 = vpop.f32.mrf.mxu0
        %v2625 = vpop.f32.mrf.mxu0
        %v2626 = vadd.f32 0.0, %v2625
        %v2627 = vpop.f32.mrf.mxu0
        %2628 = vmatprep.mubr.bf16.mxu0 0
        %2629 = vmatmul.mubr.bf16.gmra.mxu0 %v2560
        %v2630 = vpop.f32.mrf.mxu0
        %v2631 = vadd.f32 0.0, %v2630
        %v2632 = vpop.f32.mrf.mxu0
        %v2633 = vpop.f32.mrf.mxu0
        %v2634 = vadd.f32 0.0, %v2633
        %v2635 = vpop.f32.mrf.mxu0
        %2636 = vmatprep.mubr.bf16.mxu0 0
        %2637 = vmatmul.mubr.bf16.gmra.mxu0 %v2563
        %v2638 = vpop.f32.mrf.mxu0
        %v2639 = vadd.f32 0.0, %v2638
        %v2640 = vpop.f32.mrf.mxu0
        %v2641 = vpop.f32.mrf.mxu0
        %v2642 = vadd.f32 0.0, %v2641
        %v2643 = vpop.f32.mrf.mxu0
        %2644 = vmatprep.mubr.bf16.mxu0 0
        %2645 = vmatmul.mubr.bf16.gmra.mxu0 %v2566
        %v2646 = vpop.f32.mrf.mxu0
        %v2647 = vadd.f32 0.0, %v2646
        %v2648 = vpop.f32.mrf.mxu0
        %v2649 = vpop.f32.mrf.mxu0
        %v2650 = vadd.f32 0.0, %v2649
        %v2651 = vpop.f32.mrf.mxu0
        %2652 = vmatprep.mubr.bf16.mxu0 0
        %2653 = vmatmul.mubr.bf16.gmra.mxu0 %v2569
        %v2654 = vpop.f32.mrf.mxu0
        %v2655 = vadd.f32 0.0, %v2654
        %v2656 = vpop.f32.mrf.mxu0
        %v2657 = vpop.f32.mrf.mxu0
        %v2658 = vadd.f32 0.0, %v2657
        %v2659 = vpop.f32.mrf.mxu0
        %2660 = vmatprep.mubr.bf16.mxu0 0
        %2661 = vmatmul.mubr.bf16.gmra.mxu0 %v2572
        %v2662 = vpop.f32.mrf.mxu0
        %v2663 = vadd.f32 0.0, %v2662
        %v2664 = vpop.f32.mrf.mxu0
        %v2665 = vpop.f32.mrf.mxu0
        %v2666 = vadd.f32 0.0, %v2665
        %v2667 = vpop.f32.mrf.mxu0
        %2668 = vmatprep.mubr.bf16.mxu0 0
        %2669 = vmatmul.mubr.bf16.gmra.mxu0 %v2575
        %v2670 = vpop.f32.mrf.mxu0
        %v2671 = vadd.f32 0.0, %v2670
        %v2672 = vpop.f32.mrf.mxu0
        %v2673 = vpop.f32.mrf.mxu0
        %v2674 = vadd.f32 0.0, %v2673
        %v2675 = vpop.f32.mrf.mxu0
        %2676 = vdwg.mxu0
        %v2677 = vadd.f32 %v2423, %v2615
        %v2678 = vadd.f32 %v2424, %v2618
        %v2679 = vadd.f32 %v2425, %v2623
        %v2680 = vadd.f32 %v2426, %v2626
        %v2681 = vadd.f32 %v2427, %v2631
        %v2682 = vadd.f32 %v2428, %v2634
        %v2683 = vadd.f32 %v2429, %v2639
        %v2684 = vadd.f32 %v2430, %v2642
        %v2685 = vadd.f32 %v2431, %v2647
        %v2686 = vadd.f32 %v2432, %v2650
        %v2687 = vadd.f32 %v2433, %v2655
        %v2688 = vadd.f32 %v2434, %v2658
        %v2689 = vadd.f32 %v2435, %v2663
        %v2690 = vadd.f32 %v2436, %v2666
        %v2691 = vadd.f32 %v2437, %v2671
        %v2692 = vadd.f32 %v2438, %v2674
        %v2693 = vld [vmem:[%s222] sm:$0x1]
        %v2695 = vlaneseq
        %v2696 = vshrl.u32 %v2695, 7
        %v2697 = vsub.s32 0, %v2696
        %v2698 = vrot.slane %v2693, %v2697
        %v2700 = vadd.f32 %v2677, %v2698
        %v2701 = vadd.f32 %v2678, %v2698
        %v2702 = vadd.f32 %v2679, %v2698
        %v2703 = vadd.f32 %v2680, %v2698
        %v2704 = vadd.f32 %v2681, %v2698
        %v2705 = vadd.f32 %v2682, %v2698
        %v2706 = vadd.f32 %v2683, %v2698
        %v2707 = vadd.f32 %v2684, %v2698
        %v2708 = vadd.f32 %v2685, %v2698
        %v2709 = vadd.f32 %v2686, %v2698
        %v2710 = vadd.f32 %v2687, %v2698
        %v2711 = vadd.f32 %v2688, %v2698
        %v2712 = vadd.f32 %v2689, %v2698
        %v2713 = vadd.f32 %v2690, %v2698
        %v2714 = vadd.f32 %v2691, %v2698
        %v2715 = vadd.f32 %v2692, %v2698
        %v2716 = vmax.f32 %v2700, 0.0
        %v2717 = vmax.f32 %v2701, 0.0
        %v2718 = vmax.f32 %v2702, 0.0
        %v2719 = vmax.f32 %v2703, 0.0
        %v2720 = vmax.f32 %v2704, 0.0
        %v2721 = vmax.f32 %v2705, 0.0
        %v2722 = vmax.f32 %v2706, 0.0
        %v2723 = vmax.f32 %v2707, 0.0
        %v2724 = vmax.f32 %v2708, 0.0
        %v2725 = vmax.f32 %v2709, 0.0
        %v2726 = vmax.f32 %v2710, 0.0
        %v2727 = vmax.f32 %v2711, 0.0
        %v2728 = vmax.f32 %v2712, 0.0
        %v2729 = vmax.f32 %v2713, 0.0
        %v2730 = vmax.f32 %v2714, 0.0
        %v2731 = vmax.f32 %v2715, 0.0
        %v2732 = vpack.c.bf16 %v2717, %v2716
        %v2733 = vpack.c.bf16 %v2719, %v2718
        %v2734 = vpack.c.bf16 %v2721, %v2720
        %v2735 = vpack.c.bf16 %v2723, %v2722
        %v2736 = vpack.c.bf16 %v2725, %v2724
        %v2737 = vpack.c.bf16 %v2727, %v2726
        %v2738 = vpack.c.bf16 %v2729, %v2728
        %v2739 = vpack.c.bf16 %v2731, %v2730
        %v2748 = vunpack.c.l.b16 %v2732
        %v2749 = vunpack.c.h.b16 %v2732
        %v2750 = vunpack.c.l.b16 %v2733
        %v2751 = vunpack.c.h.b16 %v2733
        %v2752 = vunpack.c.l.b16 %v2734
        %v2753 = vunpack.c.h.b16 %v2734
        %v2754 = vunpack.c.l.b16 %v2735
        %v2755 = vunpack.c.h.b16 %v2735
        %v2756 = vunpack.c.l.b16 %v2736
        %v2757 = vunpack.c.h.b16 %v2736
        %v2758 = vunpack.c.l.b16 %v2737
        %v2759 = vunpack.c.h.b16 %v2737
        %v2760 = vunpack.c.l.b16 %v2738
        %v2761 = vunpack.c.h.b16 %v2738
        %v2762 = vunpack.c.l.b16 %v2739
        %v2763 = vunpack.c.h.b16 %v2739
        %v2764 = vpack.c.b16 %v2748, %v2748
        %v2765 = vpack.c.b16 %v2749, %v2749
        %v2766 = vpack.c.b16 %v2750, %v2750
        %v2767 = vpack.c.b16 %v2751, %v2751
        %v2768 = vpack.c.b16 %v2752, %v2752
        %v2769 = vpack.c.b16 %v2753, %v2753
        %v2770 = vpack.c.b16 %v2754, %v2754
        %v2771 = vpack.c.b16 %v2755, %v2755
        %v2772 = vpack.c.b16 %v2756, %v2756
        %v2773 = vpack.c.b16 %v2757, %v2757
        %v2774 = vpack.c.b16 %v2758, %v2758
        %v2775 = vpack.c.b16 %v2759, %v2759
        %v2776 = vpack.c.b16 %v2760, %v2760
        %v2777 = vpack.c.b16 %v2761, %v2761
        %v2778 = vpack.c.b16 %v2762, %v2762
        %v2779 = vpack.c.b16 %v2763, %v2763
        %vm2796 = vcmask 519168
        %2797 = vst.msk [vmem:[%s210] sm:$0xf] %vm2796, %v2764
        %2798 = vst.msk [vmem:[%s210 + $0x4] sm:$0xf] %vm2796, %v2765
        %2799 = vst.msk [vmem:[%s210 + $0x8] sm:$0xf] %vm2796, %v2766
        %2800 = vst.msk [vmem:[%s210 + $0xc] sm:$0xf] %vm2796, %v2767
        %2801 = vst.msk [vmem:[%s210 + $0x10] sm:$0xf] %vm2796, %v2768
        %2802 = vst.msk [vmem:[%s210 + $0x14] sm:$0xf] %vm2796, %v2769
        %2803 = vst.msk [vmem:[%s210 + $0x18] sm:$0xf] %vm2796, %v2770
        %2804 = vst.msk [vmem:[%s210 + $0x1c] sm:$0xf] %vm2796, %v2771
        %2805 = vst.msk [vmem:[%s210 + $0x20] sm:$0xf] %vm2796, %v2772
        %2806 = vst.msk [vmem:[%s210 + $0x24] sm:$0xf] %vm2796, %v2773
        %2807 = vst.msk [vmem:[%s210 + $0x28] sm:$0xf] %vm2796, %v2774
        %2808 = vst.msk [vmem:[%s210 + $0x2c] sm:$0xf] %vm2796, %v2775
        %2809 = vst.msk [vmem:[%s210 + $0x30] sm:$0xf] %vm2796, %v2776
        %2810 = vst.msk [vmem:[%s210 + $0x34] sm:$0xf] %vm2796, %v2777
        %2811 = vst.msk [vmem:[%s210 + $0x38] sm:$0xf] %vm2796, %v2778
        %2812 = vst.msk [vmem:[%s210 + $0x3c] sm:$0xf] %vm2796, %v2779
        %s2813 = sand.u32 %s126, 1
        %s2814 = scalar_lea.sflag [#allocation3], %s2813
        %s2815 = sand.u32 %s126, 1
        %s2816 = smul.addr %s2815, 64
        %s2817 = scalar_lea.vmem [#allocation2], %s2816
        // Predicated region
        $region33: #{tpu_custom_call.1} parent=31 // pred_check
          %p2818 = pneg %p136
        $region34: #{tpu_custom_call.1} parent=31 // pred_check_branch
          %2820 = sbr.rel (%p2818) target = $region36
        $region35: #{tpu_custom_call.1} parent=31 // pred_region
          %s2821 = smul.u32 8, %s24
          %s2823 = ssub.s32 1024, 1024
          %2824 = vsyncadd %s2814, %s2823
          %s2825 = smul.addr %s2821, 2
          %s2826 = sadd.s32 %s23, %s2825
          %s2827 = smul.addr %s22, 32
          %s2828 = sadd.s32 %s2826, %s2827
          %s2829 = smul.addr %s2828, 64
          %s2830 = scalar_lea.hbm %s3, %s2829
          %s2831 = sshll.u32 %s2817, 4
          %s2832 = int_to_ptr.vmem [resolvable:$true] %s2831
          %2837 = dma.vmem_to_hbm [thread:$0]  %s2832, 1024, %s2830, %s2814, 64, 64, 4
        $region36: #{tpu_custom_call.1} parent=31 // pred_fallthru
          _
      $region32: #{tpu_custom_call.1} parent=5 // pred_fallthru
        _
      %p2838 = scmp.le.s32.totalorder 2, %s12
      // Predicated region
      $region37: #{tpu_custom_call.1} parent=5 // pred_check
        %p2839 = pneg %p2838
      $region38: #{tpu_custom_call.1} parent=5 // pred_check_branch
        %2841 = sbr.rel (%p2839) target = $region40
      $region39: #{tpu_custom_call.1} parent=5 // pred_region
        %s2842 = ssub.s32 %s12, 2
        // Predicated region
        $region41: #{tpu_custom_call.1} parent=39 // pred_check
          %p2843 = pneg %p142
        $region42: #{tpu_custom_call.1} parent=39 // pred_check_branch
          %2845 = sbr.rel (%p2843) target = $region44
        $region43: #{tpu_custom_call.1} parent=39 // pred_region
          %s2846 = sand.u32 %s127, 1
          %s2847 = scalar_lea.sflag [#allocation3], %s2846
          %s2848 = sand.u32 %s127, 1
          %s2849 = smul.addr %s2848, 64
          %s2850 = scalar_lea.vmem [#allocation2], %s2849
          %2851 = dma.done %s2847, 1024
        $region44: #{tpu_custom_call.1} parent=39 // pred_fallthru
          _
      $region40: #{tpu_custom_call.1} parent=5 // pred_fallthru
        _
    $region6: #{tpu_custom_call.1} parent=1 // loop_footer
      %s16 = sadd.s32 1, %s12
    $region7: #{tpu_custom_call.1} parent=1 // loop_footer_branch
      %11 = sbr.rel target = $region3
    $region8: #{tpu_custom_call.1} parent=1 // loop_exit
      _
    %2852 = vsyncpa [#allocation3], 1
    %s2853 = scalar_lea.sflag [#allocation3], 1
    %2854 = vsyncpa %s2853, 1

</llo_original>
